<compile_context>
chip_gen: v5e
topology: v5e:2x2
jax: 0.10.0
libtpu: 0.0.40
codegen_flags: <defaults>
</compile_context>

<pallas_src>
import functools

import jax
import jax.numpy as jnp
from jax import lax
from jax.experimental import pallas as pl
from jax.experimental.pallas import tpu as pltpu


def _focal_kernel(x_ref, lab_ref, *rest, gamma: float, ignore_index: int,
                  has_alpha: bool):
    if has_alpha:
        alpha_ref, sum_ref = rest
    else:
        (sum_ref,) = rest

    s = pl.program_id(1)

    @pl.when(s == 0)
    def _init():
        sum_ref[...] = jnp.zeros_like(sum_ref)

    x = x_ref[...].astype(jnp.float32)            # (TN, C) f32 compute
    lab = lab_ref[...]                            # (TN, 1) int32

    # Row-wise log-softmax pieces; full log_p is never materialized.
    m = jnp.max(x, axis=-1, keepdims=True)        # (TN, 1)
    shifted = x - m                               # dense VALU pass
    lse = jnp.log(jnp.sum(jnp.exp(shifted), axis=-1, keepdims=True))   # EUP + XLU

    # Gather shifted[row, label] (and alpha[label]) with selects -> no 0*NaN hazard.
    lane = lax.broadcasted_iota(jnp.int32, x.shape, 1)
    match = lane == lab                           # dense compare
    gathered = jnp.sum(jnp.where(match, shifted, 0.0), axis=-1, keepdims=True)

    # Gate: negative labels (negative ignore_index rows, the -1 sentinel used for the
    # padded tail, and any garbage tail rows of a partial last block) contribute
    # exactly 0 and cannot propagate a garbage row's NaN lse.
    safe = lab >= 0
    log_pt = jnp.where(safe, gathered - lse, 0.0)     # (TN, 1), <= 0 for real rows

    pt = jnp.exp(log_pt)
    one_minus_pt = jnp.maximum(1.0 - pt, 0.0)         # lower clamp only (pt <= 1)
    g = float(gamma)
    if g.is_integer() and 0.0 <= g <= 8.0:
        if int(g) == 0:
            focal = jnp.ones_like(one_minus_pt)
        else:
            focal = one_minus_pt                      # gamma-1 extra multiplies
            for _ in range(int(g) - 1):
                focal = focal * one_minus_pt
    else:
        # Non-integer gamma: safe pow via exp/log (focal≈0 at pt==1; ce is 0 there).
        focal = jnp.exp(g * jnp.log(jnp.maximum(one_minus_pt, 1e-12)))

    loss = focal * (-log_pt)                          # (TN, 1)
    if has_alpha:
        a_t = jnp.sum(jnp.where(match, alpha_ref[...], 0.0), axis=-1, keepdims=True)
        loss = loss * a_t
    if ignore_index >= 0:
        # Only needed when ignore_index can collide with a non-negative label.
        loss = loss * (lab != ignore_index).astype(jnp.float32)

    # Per-step scalar accumulate into the grid-resident (1,1) output block.
    sum_ref[...] += jnp.sum(loss, axis=(0, 1), keepdims=True)


def focal_loss(outputs, labels, alpha=None, gamma: float = 2.0,
               reduction: str = "mean", ignore_index: int = -100,
               tile_n=None, n_chunks: int = 1):
    """Pallas implementation of FocalLoss.forward (reductions 'mean'/'sum')."""
    assert outputs.ndim == 2 and labels.ndim == 1
    assert outputs.shape[0] == labels.shape[0]
    N, C = outputs.shape

    x = jnp.asarray(outputs)                      # keep native dtype (bf16 -> half DMA)
    itemsize = jnp.dtype(x.dtype).itemsize
    pack = max(8, 32 // max(itemsize, 1))         # sublane packing granularity

    vmem_cap = 128 << 20
    try:
        vmem_cap = int(pltpu.get_tpu_info().vmem_capacity_bytes)
    except Exception:
        pass
    small_vmem = vmem_cap <= (64 << 20)           # v7x-class part

    # f32-equivalent dense-tile budget (in-kernel temporaries are f32 regardless of
    # input dtype): ~12 MiB on 128-MiB VMEM parts, ~6 MiB on 64-MiB parts.
    budget_f32 = (6 << 20) if small_vmem else (12 << 20)
    if tile_n is None:
        tile_n = max(budget_f32 // (C * 4), pack)
    tile_n = int(tile_n)
    if tile_n >= N:
        tile_n = N                                # full-extent block: always layout-legal
    else:
        tile_n = max((tile_n // pack) * pack, pack)
    # TODO(synk): for vocab-scale C (C*4 >> budget) an inner C-tiling axis with an
    # online logsumexp would keep tiles MiB-sized; not needed for moderate C.

    n_chunks = max(int(n_chunks), 1)              # 2 -> one chunk per TensorCore on v7x
    n_blocks = -(-N // tile_n)
    n_steps = -(-n_blocks // n_chunks)
    lab_rows = n_chunks * n_steps * tile_n

    labels_i32 = jnp.asarray(labels).astype(jnp.int32)
    # Valid-row count done in the wrapper (f32 is exact for any realistic row count).
    n_valid = jnp.sum((labels_i32 != ignore_index).astype(jnp.float32))

    # Pad only the labels (cheap) with a -1 sentinel: it never matches a class lane,
    # so padded / garbage-logit rows contribute exactly 0 inside the kernel.
    lab_padded = labels_i32
    if lab_rows != N:
        lab_padded = jnp.pad(labels_i32, (0, lab_rows - N), constant_values=-1)
    lab2 = lab_padded.reshape(lab_rows, 1)

    has_alpha = alpha is not None
    kernel = functools.partial(_focal_kernel, gamma=float(gamma),
                               ignore_index=int(ignore_index), has_alpha=has_alpha)

    last_block = n_blocks - 1
    if n_chunks * n_steps == n_blocks:
        logits_map = lambda c, s: (c * n_steps + s, 0)
    else:
        # Chunk-padding steps clamp to the last real block; their label blocks are
        # all-sentinel, so they contribute nothing.
        logits_map = lambda c, s: (jnp.minimum(c * n_steps + s, last_block), 0)

    in_specs = [
        pl.BlockSpec((tile_n, C), logits_map),                         # logits
        pl.BlockSpec((tile_n, 1), lambda c, s: (c * n_steps + s, 0)),  # labels
    ]
    args = [x, lab2]
    if has_alpha:
        in_specs.append(pl.BlockSpec((1, C), lambda c, s: (0, 0)))     # alpha weights
        args.append(jnp.asarray(alpha, jnp.float32).reshape(1, C))

    # VMEM limit: double-buffered native-dtype tile + ~3 f32 dense temporaries + margin.
    tile_hbm = tile_n * C * itemsize
    work_f32 = tile_n * C * 4
    need = 2 * tile_hbm + 3 * work_f32 + (4 << 20)
    cap = (44 << 20) if small_vmem else (100 << 20)
    vmem_limit = int(min(max(need, 32 << 20), cap))

    sums = pl.pallas_call(
        kernel,
        out_shape=jax.ShapeDtypeStruct((n_chunks, 1, 1), jnp.float32),
        grid_spec=pltpu.PrefetchScalarGridSpec(
            num_scalar_prefetch=0,
            grid=(n_chunks, n_steps),
            in_specs=in_specs,
            out_specs=pl.BlockSpec((None, 1, 1), lambda c, s: (c, 0, 0)),
        ),
        compiler_params=pltpu.CompilerParams(
            dimension_semantics=("parallel", "arbitrary"),
            vmem_limit_bytes=vmem_limit),
    )(*args)

    total = jnp.sum(sums)
    if reduction == "mean":
        # PyTorch returns 0.0 when every label is ignored.
        return jnp.where(n_valid > 0, total / jnp.maximum(n_valid, 1.0),
                         jnp.float32(0.0))
    elif reduction == "sum":
        return total
    else:
        # TODO(synk): reduction='none' returns only the unignored rows (data-dependent
        # length) which has no static-shape Pallas equivalent.
        raise NotImplementedError("only 'mean' and 'sum' reductions supported")


def _reference_focal_loss(outputs, labels, alpha, gamma, ignore_index,
                          reduction="mean"):
    """Pure-JAX reference matching the PyTorch module."""
    x = jnp.asarray(outputs).astype(jnp.float32)
    lab = jnp.asarray(labels).astype(jnp.int32)
    C = x.shape[-1]
    valid = lab != ignore_index
    log_p = jax.nn.log_softmax(x, axis=-1)
    safe_lab = jnp.where(valid, lab, 0)
    log_pt = jnp.take_along_axis(log_p, safe_lab[:, None], axis=-1)[:, 0]
    a = (jnp.ones((C,), jnp.float32) if alpha is None
         else jnp.asarray(alpha, jnp.float32))
    a_t = a[safe_lab]
    ce = -a_t * log_pt
    pt = jnp.exp(log_pt)
    focal = jnp.power(jnp.clip(1.0 - pt, 0.0, 1.0), gamma)
    loss = focal * ce * valid.astype(jnp.float32)
    if reduction == "sum":
        return jnp.sum(loss)
    n_valid = jnp.sum(valid.astype(jnp.float32))
    return jnp.where(n_valid > 0, jnp.sum(loss) / jnp.maximum(n_valid, 1.0), 0.0)


if __name__ == "__main__":
    key = jax.random.PRNGKey(0)
    N, C = 300, 128
    ignore_index = -100
    # Deterministic per-class alpha weights (shape [C]).
    alpha = 0.5 + 0.5 * jnp.arange(C, dtype=jnp.float32) / C

    k_out, k_lab = jax.random.split(key)
    outputs = jax.random.normal(k_out, (N, C), dtype=jnp.float32)
    labels = jax.random.randint(k_lab, (N,), 0, C, dtype=jnp.int32)
    # Mark a few positions as ignored (including the last row, exercising the tail).
    labels = labels.at[3].set(ignore_index).at[10].set(ignore_index)
    labels = labels.at[N - 1].set(ignore_index)

    # 1) f32 logits, auto byte-budgeted tile (single full-extent block), mean.
    loss = focal_loss(outputs, labels, alpha=alpha, gamma=2.0,
                      reduction="mean", ignore_index=ignore_index)
    loss = jax.block_until_ready(loss)
    ref = _reference_focal_loss(outputs, labels, alpha, 2.0, ignore_index, "mean")
    assert jnp.allclose(loss, ref, atol=1e-5, rtol=1e-5), (loss, ref)

    # 2) Explicit small tile -> multi-step accumulation + partial last block (no pad).
    loss_t = focal_loss(outputs, labels, alpha=alpha, gamma=2.0,
                        reduction="mean", ignore_index=ignore_index, tile_n=128)
    loss_t = jax.block_until_ready(loss_t)
    assert jnp.allclose(loss_t, ref, atol=1e-5, rtol=1e-5), (loss_t, ref)

    # 3) bf16 logits fed natively + two-chunk grid ("parallel" core split), sum.
    out_bf16 = outputs.astype(jnp.bfloat16)
    loss_bf = focal_loss(out_bf16, labels, alpha=alpha, gamma=2.0,
                         reduction="sum", ignore_index=ignore_index,
                         tile_n=64, n_chunks=2)
    loss_bf = jax.block_until_ready(loss_bf)
    ref_bf = _reference_focal_loss(out_bf16, labels, alpha, 2.0, ignore_index, "sum")
    assert jnp.allclose(loss_bf, ref_bf, atol=1e-2, rtol=1e-4), (loss_bf, ref_bf)

    # 4) Non-integer gamma fallback path, alpha=None, sum reduction.
    loss_g = focal_loss(outputs, labels, alpha=None, gamma=1.5,
                        reduction="sum", ignore_index=ignore_index, tile_n=128)
    loss_g = jax.block_until_ready(loss_g)
    ref_g = _reference_focal_loss(outputs, labels, None, 1.5, ignore_index, "sum")
    assert jnp.allclose(loss_g, ref_g, atol=1e-2, rtol=1e-4), (loss_g, ref_g)

    print("KERNEL_OK")
</pallas_src>

<mosaic_0001>
module attributes {stable_mosaic.version = 11 : i64} {
  func.func @_focal_kernel(%arg0: i32, %arg1: i32, %arg2: memref<300x128xf32, #tpu.memory_space<vmem>>, %arg3: memref<300x1xi32, #tpu.memory_space<vmem>>, %arg4: memref<1x128xf32, #tpu.memory_space<vmem>>, %arg5: memref<1x1x1xf32, #tpu.memory_space<vmem>>) attributes {dimension_semantics = [#tpu.dimension_semantics<parallel>, #tpu.dimension_semantics<arbitrary>], iteration_bounds = array<i64: 1, 1>, scalar_prefetch = 0 : i64, scratch_operands = 0 : i64, tpu.core_type = #tpu.core_type<tc>, window_params = [{transform_indices = @transform_0, window_bounds = array<i64: 300, 128>}, {transform_indices = @transform_1, window_bounds = array<i64: 300, 1>}, {pipeline_mode = #tpu.pipeline_mode<synchronous>, transform_indices = @transform_2, window_bounds = array<i64: 1, 128>}, {transform_indices = @transform_3, window_bounds = array<i64: 1, 1, 1>}]} {
    %c0_i32 = arith.constant 0 : i32
    %0 = arith.cmpi eq, %arg1, %c0_i32 : i32
    %1 = arith.extui %0 : i1 to i32
    %c0_i32_0 = arith.constant 0 : i32
    %2 = arith.cmpi ne, %1, %c0_i32_0 : i32
    scf.if %2 {
      %cst_23 = arith.constant 0.000000e+00 : f32
      %53 = vector.broadcast %cst_23 : f32 to vector<1x1xf32>
      %c0_24 = arith.constant 0 : index
      %c0_25 = arith.constant 0 : index
      %c0_26 = arith.constant 0 : index
      %54 = vector.load %arg5[%c0_24, %c0_25, %c0_26] : memref<1x1x1xf32, #tpu.memory_space<vmem>>, vector<1x1x1xf32>
      %55 = vector.shape_cast %54 : vector<1x1x1xf32> to vector<1x1xf32>
      %56 = vector.shape_cast %53 : vector<1x1xf32> to vector<1x1x1xf32>
      tpu.vector_store %arg5[%c0_24, %c0_25, %c0_26], %56 {strides = array<i32>} : memref<1x1x1xf32, #tpu.memory_space<vmem>>, vector<1x1x1xf32>,
    } else {
    }
    %c0 = arith.constant 0 : index
    %c0_1 = arith.constant 0 : index
    %3 = vector.load %arg2[%c0, %c0_1] : memref<300x128xf32, #tpu.memory_space<vmem>>, vector<300x128xf32>
    %c0_2 = arith.constant 0 : index
    %c0_3 = arith.constant 0 : index
    %4 = vector.load %arg3[%c0_2, %c0_3] : memref<300x1xi32, #tpu.memory_space<vmem>>, vector<300x1xi32>
    %cst = arith.constant dense<0xFF800000> : vector<300xf32>
    %5 = vector.multi_reduction <maximumf>, %3, %cst [1] : vector<300x128xf32> to vector<300xf32>
    %6 = vector.shape_cast %5 : vector<300xf32> to vector<300x1xf32>
    %7 = vector.broadcast %6 : vector<300x1xf32> to vector<300x128xf32>
    %8 = arith.subf %3, %7 : vector<300x128xf32>
    %9 = math.exp %8 : vector<300x128xf32>
    %cst_4 = arith.constant dense<0.000000e+00> : vector<300xf32>
    %10 = vector.multi_reduction <add>, %9, %cst_4 [1] : vector<300x128xf32> to vector<300xf32>
    %11 = vector.shape_cast %10 : vector<300xf32> to vector<300x1xf32>
    %12 = math.log %11 : vector<300x1xf32>
    %13 = tpu.iota {dimensions = array<i32: 1>} : vector<300x128xi32>
    %14 = vector.broadcast %4 : vector<300x1xi32> to vector<300x128xi32>
    %15 = arith.cmpi eq, %13, %14 : vector<300x128xi32>
    %cst_5 = arith.constant 0.000000e+00 : f32
    %16 = vector.broadcast %cst_5 : f32 to vector<300x128xf32>
    %17 = arith.select %15, %8, %16 : vector<300x128xi1>, vector<300x128xf32>
    %cst_6 = arith.constant dense<0.000000e+00> : vector<300xf32>
    %18 = vector.multi_reduction <add>, %17, %cst_6 [1] : vector<300x128xf32> to vector<300xf32>
    %19 = vector.shape_cast %18 : vector<300xf32> to vector<300x1xf32>
    %c0_i32_7 = arith.constant 0 : i32
    %20 = vector.broadcast %c0_i32_7 : i32 to vector<300x1xi32>
    %21 = arith.cmpi sge, %4, %20 : vector<300x1xi32>
    %22 = arith.subf %19, %12 : vector<300x1xf32>
    %cst_8 = arith.constant 0.000000e+00 : f32
    %23 = vector.broadcast %cst_8 : f32 to vector<300x1xf32>
    %24 = arith.select %21, %22, %23 : vector<300x1xi1>, vector<300x1xf32>
    %25 = math.exp %24 : vector<300x1xf32>
    %cst_9 = arith.constant 1.000000e+00 : f32
    %26 = vector.broadcast %cst_9 : f32 to vector<300x1xf32>
    %27 = arith.subf %26, %25 : vector<300x1xf32>
    %cst_10 = arith.constant 0.000000e+00 : f32
    %28 = vector.broadcast %cst_10 : f32 to vector<300x1xf32>
    %29 = arith.maximumf %27, %28 : vector<300x1xf32>
    %30 = arith.mulf %29, %29 : vector<300x1xf32>
    %cst_11 = arith.constant 0.000000e+00 : f32
    %31 = vector.broadcast %cst_11 : f32 to vector<300x1xf32>
    %32 = arith.subf %31, %24 : vector<300x1xf32>
    %33 = arith.mulf %30, %32 : vector<300x1xf32>
    %c0_12 = arith.constant 0 : index
    %c0_13 = arith.constant 0 : index
    %34 = vector.load %arg4[%c0_12, %c0_13] : memref<1x128xf32, #tpu.memory_space<vmem>>, vector<1x128xf32>
    %cst_14 = arith.constant 0.000000e+00 : f32
    %35 = vector.shape_cast %34 : vector<1x128xf32> to vector<1x128xf32>
    %36 = vector.broadcast %35 : vector<1x128xf32> to vector<300x128xf32>
    %37 = vector.broadcast %cst_14 : f32 to vector<300x128xf32>
    %38 = arith.select %15, %36, %37 : vector<300x128xi1>, vector<300x128xf32>
    %cst_15 = arith.constant dense<0.000000e+00> : vector<300xf32>
    %39 = vector.multi_reduction <add>, %38, %cst_15 [1] : vector<300x128xf32> to vector<300xf32>
    %40 = vector.shape_cast %39 : vector<300xf32> to vector<300x1xf32>
    %41 = arith.mulf %33, %40 : vector<300x1xf32>
    %c0_16 = arith.constant 0 : index
    %c0_17 = arith.constant 0 : index
    %c0_18 = arith.constant 0 : index
    %42 = vector.load %arg5[%c0_16, %c0_17, %c0_18] : memref<1x1x1xf32, #tpu.memory_space<vmem>>, vector<1x1x1xf32>
    %43 = vector.shape_cast %42 : vector<1x1x1xf32> to vector<1x1xf32>
    %44 = vector.shape_cast %41 : vector<300x1xf32> to vector<1x300x1xf32>
    %cst_19 = arith.constant dense<0.000000e+00> : vector<1xf32>
    %45 = vector.multi_reduction <add>, %44, %cst_19 [1, 2] : vector<1x300x1xf32> to vector<1xf32>
    %46 = vector.shape_cast %45 : vector<1xf32> to vector<1x1x1xf32>
    %47 = vector.extract %46[0, 0, 0] : f32 from vector<1x1x1xf32>
    %48 = vector.broadcast %47 : f32 to vector<1x1xf32>
    %49 = arith.addf %43, %48 : vector<1x1xf32>
    %c0_20 = arith.constant 0 : index
    %c0_21 = arith.constant 0 : index
    %c0_22 = arith.constant 0 : index
    %50 = vector.load %arg5[%c0_20, %c0_21, %c0_22] : memref<1x1x1xf32, #tpu.memory_space<vmem>>, vector<1x1x1xf32>
    %51 = vector.shape_cast %50 : vector<1x1x1xf32> to vector<1x1xf32>
    %52 = vector.shape_cast %49 : vector<1x1xf32> to vector<1x1x1xf32>
    tpu.vector_store %arg5[%c0_20, %c0_21, %c0_22], %52 {strides = array<i32>} : memref<1x1x1xf32, #tpu.memory_space<vmem>>, vector<1x1x1xf32>,
    return
  }
  func.func @transform_0(%arg0: i32, %arg1: i32) -> (i32, i32) {
    %c1_i32 = arith.constant 1 : i32
    %0 = arith.muli %arg0, %c1_i32 : i32
    %1 = arith.addi %0, %arg1 : i32
    %c0_i32 = arith.constant 0 : i32
    %c0_i32_0 = arith.constant 0 : i32
    return %1, %c0_i32 : i32, i32
  }
  func.func @transform_1(%arg0: i32, %arg1: i32) -> (i32, i32) {
    %c1_i32 = arith.constant 1 : i32
    %0 = arith.muli %arg0, %c1_i32 : i32
    %1 = arith.addi %0, %arg1 : i32
    %c0_i32 = arith.constant 0 : i32
    %c0_i32_0 = arith.constant 0 : i32
    return %1, %c0_i32 : i32, i32
  }
  func.func @transform_2(%arg0: i32, %arg1: i32) -> (i32, i32) {
    %c0_i32 = arith.constant 0 : i32
    %c0_i32_0 = arith.constant 0 : i32
    %c0_i32_1 = arith.constant 0 : i32
    return %c0_i32, %c0_i32_0 : i32, i32
  }
  func.func @transform_3(%arg0: i32, %arg1: i32) -> (i32, i32, i32) {
    %c0_i32 = arith.constant 0 : i32
    %c0_i32_0 = arith.constant 0 : i32
    %c0_i32_1 = arith.constant 0 : i32
    return %arg0, %c0_i32, %c0_i32_0 : i32, i32, i32
  }
}

</mosaic_0001>

<llo_original>
// kernel: tpu_custom_call.1
$region0: #{tpu_custom_call.1}
  #allocation0 [shape = 'u32[]', space=smem, size = 0x4, offset = 0x4, fixed_abs, tag = 'smem constant byte address 0x4 - core index']
  #allocation1 [shape = 'u32[72,128]{1,0:T(1,128)}', space=vmem, size = 0x9000, scoped, tag = 'internal scratch']
  %s0 = inlined_call_operand.vmem [shape: f32[300,128], index: 0, kind: input, shape index: {}]
  %s1 = inlined_call_operand.vmem [shape: s32[300,1], index: 1, kind: input, shape index: {}]
  %s2 = inlined_call_operand.vmem [shape: f32[1,128], index: 2, kind: input, shape index: {}]
  %s3 = inlined_call_operand.hbm [shape: f32[1,1,1], index: 3, kind: output, shape index: {}]
  %s4 = sld [smem:[#allocation0]]
  $region26: #{tpu_custom_call.1} parent=0
    _
  %s6 = ssub.s32 1, %s4
  %s7 = scalar_select 0, %s6, %s4
  $region1: #{tpu_custom_call.1} parent=0
    #allocation2 [shape = 'u8[512]{0}', space=vmem, size = 0x400, scoped, tag = 'output window, operand 0, single buffered']
    #allocation3 [shape = 's32[1]{0}', space=sflag, size = 0x4, scoped, tag = 'scoped memory for tpu_custom_call.1']
    %8 = vsyncpa [#allocation3], 0
    // Predicated region
    $region2: #{tpu_custom_call.1} parent=1 // pred_check
      _
    $region3: #{tpu_custom_call.1} parent=1 // pred_check_branch
      %10 = sbr.rel (0) target = $region5
    $region4: #{tpu_custom_call.1} parent=1 // pred_region
      %s11 = sadd.s32 0, 0
      %s12 = smul.u32 38, %s11
      %p13 = scmp.lt.s32.totalorder %s12, 37
      %s14 = scalar_select %p13, %s12, 37
      %s15 = smul.addr %s14, 8
      %s16 = scalar_lea.vmem %s0, %s15
      %s17 = sadd.s32 0, 0
      %s18 = smul.u32 38, %s17
    $region5: #{tpu_custom_call.1} parent=1 // pred_fallthru
      _
    // Predicated region
    $region6: #{tpu_custom_call.1} parent=1 // pred_check
      _
    $region7: #{tpu_custom_call.1} parent=1 // pred_check_branch
      %20 = sbr.rel (0) target = $region9
    $region8: #{tpu_custom_call.1} parent=1 // pred_region
      %s21 = sadd.s32 0, 0
      %s22 = smul.u32 38, %s21
      %p23 = scmp.lt.s32.totalorder %s22, 37
      %s24 = scalar_select %p23, %s22, 37
      %s25 = smul.addr %s24, 8
      %s26 = scalar_lea.vmem %s1, %s25
      %s27 = sadd.s32 0, 0
      %s28 = smul.u32 38, %s27
    $region9: #{tpu_custom_call.1} parent=1 // pred_fallthru
      _
    // Predicated region
    $region10: #{tpu_custom_call.1} parent=1 // pred_check
      _
    $region11: #{tpu_custom_call.1} parent=1 // pred_check_branch
      %30 = sbr.rel (0) target = $region13
    $region12: #{tpu_custom_call.1} parent=1 // pred_region
      _
    $region13: #{tpu_custom_call.1} parent=1 // pred_fallthru
      _
    %s31 = sadd.s32 0, 0
    %s32 = smul.u32 38, %s31
    %p33 = scmp.lt.s32.totalorder %s32, 37
    %s34 = scalar_select %p33, %s32, 37
    %s35 = smul.addr %s34, 8
    %s36 = scalar_lea.vmem %s0, %s35
    %s37 = sadd.s32 0, 0
    %s38 = smul.u32 38, %s37
    %p39 = scmp.lt.s32.totalorder %s38, 37
    %s40 = scalar_select %p39, %s38, 37
    %s41 = smul.addr %s40, 8
    %s42 = scalar_lea.vmem %s1, %s41
    %s43 = sadd.s32 0, 0
    %s44 = smul.u32 38, %s43
    %p45 = scmp.lt.s32.totalorder %s44, 37
    %s46 = scalar_select %p45, %s44, 37
    %s47 = smul.addr %s46, 8
    %s48 = scalar_lea.vmem %s0, %s47
    %s49 = sadd.s32 0, 0
    %s50 = smul.u32 38, %s49
    %s51 = sadd.s32 0, 0
    %s52 = smul.u32 38, %s51
    %p53 = scmp.lt.s32.totalorder %s52, 37
    %s54 = scalar_select %p53, %s52, 37
    %s55 = smul.addr %s54, 8
    %s56 = scalar_lea.vmem %s1, %s55
    %s57 = sadd.s32 0, 0
    %s58 = smul.u32 38, %s57
    %p59 = scmp.eq.s32.totalorder 0, 0
    // Predicated region
    $region14: #{tpu_custom_call.1} parent=1 // pred_check
      %p60 = pneg %p59
    $region15: #{tpu_custom_call.1} parent=1 // pred_check_branch
      %62 = sbr.rel (%p60) target = $region17
    $region16: #{tpu_custom_call.1} parent=1 // pred_region
      %vm63 = vcmask 0
      %64 = vst.msk [vmem:[#allocation2] sm:$0x1] %vm63, 0.0
    $region17: #{tpu_custom_call.1} parent=1 // pred_fallthru
      _
    %v65 = vld [vmem:[%s48] sm:$0xff]
    %v66 = vld [vmem:[%s48 + $0x8] sm:$0xff]
    %v67 = vld [vmem:[%s48 + $0x10] sm:$0xff]
    %v68 = vld [vmem:[%s48 + $0x18] sm:$0xff]
    %v69 = vld [vmem:[%s48 + $0x20] sm:$0xff]
    %v70 = vld [vmem:[%s48 + $0x28] sm:$0xff]
    %v71 = vld [vmem:[%s48 + $0x30] sm:$0xff]
    %v72 = vld [vmem:[%s48 + $0x38] sm:$0xff]
    %v73 = vld [vmem:[%s48 + $0x40] sm:$0xff]
    %v74 = vld [vmem:[%s48 + $0x48] sm:$0xff]
    %v75 = vld [vmem:[%s48 + $0x50] sm:$0xff]
    %v76 = vld [vmem:[%s48 + $0x58] sm:$0xff]
    %v77 = vld [vmem:[%s48 + $0x60] sm:$0xff]
    %v78 = vld [vmem:[%s48 + $0x68] sm:$0xff]
    %v79 = vld [vmem:[%s48 + $0x70] sm:$0xff]
    %v80 = vld [vmem:[%s48 + $0x78] sm:$0xff]
    %v81 = vld [vmem:[%s48 + $0x80] sm:$0xff]
    %v82 = vld [vmem:[%s48 + $0x88] sm:$0xff]
    %v83 = vld [vmem:[%s48 + $0x90] sm:$0xff]
    %v84 = vld [vmem:[%s48 + $0x98] sm:$0xff]
    %v85 = vld [vmem:[%s48 + $0xa0] sm:$0xff]
    %v86 = vld [vmem:[%s48 + $0xa8] sm:$0xff]
    %v87 = vld [vmem:[%s48 + $0xb0] sm:$0xff]
    %v88 = vld [vmem:[%s48 + $0xb8] sm:$0xff]
    %v89 = vld [vmem:[%s48 + $0xc0] sm:$0xff]
    %v90 = vld [vmem:[%s48 + $0xc8] sm:$0xff]
    %v91 = vld [vmem:[%s48 + $0xd0] sm:$0xff]
    %v92 = vld [vmem:[%s48 + $0xd8] sm:$0xff]
    %v93 = vld [vmem:[%s48 + $0xe0] sm:$0xff]
    %v94 = vld [vmem:[%s48 + $0xe8] sm:$0xff]
    %v95 = vld [vmem:[%s48 + $0xf0] sm:$0xff]
    %v96 = vld [vmem:[%s48 + $0xf8] sm:$0xff]
    %v97 = vld [vmem:[%s48 + $0x100] sm:$0xff]
    %v98 = vld [vmem:[%s48 + $0x108] sm:$0xff]
    %v99 = vld [vmem:[%s48 + $0x110] sm:$0xff]
    %v100 = vld [vmem:[%s48 + $0x118] sm:$0xff]
    %v101 = vld [vmem:[%s48 + $0x120] sm:$0xff]
    %v102 = vld [vmem:[%s48 + $0x128] sm:$0xf]
    %v103 = vld [vmem:[%s56] sm:$0xff]
    %v104 = vld [vmem:[%s56 + $0x8] sm:$0xff]
    %v105 = vld [vmem:[%s56 + $0x10] sm:$0xff]
    %v106 = vld [vmem:[%s56 + $0x18] sm:$0xff]
    %v107 = vld [vmem:[%s56 + $0x20] sm:$0xff]
    %v108 = vld [vmem:[%s56 + $0x28] sm:$0xff]
    %v109 = vld [vmem:[%s56 + $0x30] sm:$0xff]
    %v110 = vld [vmem:[%s56 + $0x38] sm:$0xff]
    %v111 = vld [vmem:[%s56 + $0x40] sm:$0xff]
    %v112 = vld [vmem:[%s56 + $0x48] sm:$0xff]
    %v113 = vld [vmem:[%s56 + $0x50] sm:$0xff]
    %v114 = vld [vmem:[%s56 + $0x58] sm:$0xff]
    %v115 = vld [vmem:[%s56 + $0x60] sm:$0xff]
    %v116 = vld [vmem:[%s56 + $0x68] sm:$0xff]
    %v117 = vld [vmem:[%s56 + $0x70] sm:$0xff]
    %v118 = vld [vmem:[%s56 + $0x78] sm:$0xff]
    %v119 = vld [vmem:[%s56 + $0x80] sm:$0xff]
    %v120 = vld [vmem:[%s56 + $0x88] sm:$0xff]
    %v121 = vld [vmem:[%s56 + $0x90] sm:$0xff]
    %v122 = vld [vmem:[%s56 + $0x98] sm:$0xff]
    %v123 = vld [vmem:[%s56 + $0xa0] sm:$0xff]
    %v124 = vld [vmem:[%s56 + $0xa8] sm:$0xff]
    %v125 = vld [vmem:[%s56 + $0xb0] sm:$0xff]
    %v126 = vld [vmem:[%s56 + $0xb8] sm:$0xff]
    %v127 = vld [vmem:[%s56 + $0xc0] sm:$0xff]
    %v128 = vld [vmem:[%s56 + $0xc8] sm:$0xff]
    %v129 = vld [vmem:[%s56 + $0xd0] sm:$0xff]
    %v130 = vld [vmem:[%s56 + $0xd8] sm:$0xff]
    %v131 = vld [vmem:[%s56 + $0xe0] sm:$0xff]
    %v132 = vld [vmem:[%s56 + $0xe8] sm:$0xff]
    %v133 = vld [vmem:[%s56 + $0xf0] sm:$0xff]
    %v134 = vld [vmem:[%s56 + $0xf8] sm:$0xff]
    %v135 = vld [vmem:[%s56 + $0x100] sm:$0xff]
    %v136 = vld [vmem:[%s56 + $0x108] sm:$0xff]
    %v137 = vld [vmem:[%s56 + $0x110] sm:$0xff]
    %v138 = vld [vmem:[%s56 + $0x118] sm:$0xff]
    %v139 = vld [vmem:[%s56 + $0x120] sm:$0xff]
    %v140 = vld [vmem:[%s56 + $0x128] sm:$0xf]
    %141 = vmax.xlane.f32.xlu0 %v65
    %v142 = vpop.xlane.xlu0 %141
    %143 = vmax.xlane.f32.xlu0 %v66
    %v144 = vpop.xlane.xlu0 %143
    %145 = vmax.xlane.f32.xlu0 %v67
    %v146 = vpop.xlane.xlu0 %145
    %147 = vmax.xlane.f32.xlu0 %v68
    %v148 = vpop.xlane.xlu0 %147
    %149 = vmax.xlane.f32.xlu0 %v69
    %v150 = vpop.xlane.xlu0 %149
    %151 = vmax.xlane.f32.xlu0 %v70
    %v152 = vpop.xlane.xlu0 %151
    %153 = vmax.xlane.f32.xlu0 %v71
    %v154 = vpop.xlane.xlu0 %153
    %155 = vmax.xlane.f32.xlu0 %v72
    %v156 = vpop.xlane.xlu0 %155
    %157 = vmax.xlane.f32.xlu0 %v73
    %v158 = vpop.xlane.xlu0 %157
    %159 = vmax.xlane.f32.xlu0 %v74
    %v160 = vpop.xlane.xlu0 %159
    %161 = vmax.xlane.f32.xlu0 %v75
    %v162 = vpop.xlane.xlu0 %161
    %163 = vmax.xlane.f32.xlu0 %v76
    %v164 = vpop.xlane.xlu0 %163
    %165 = vmax.xlane.f32.xlu0 %v77
    %v166 = vpop.xlane.xlu0 %165
    %167 = vmax.xlane.f32.xlu0 %v78
    %v168 = vpop.xlane.xlu0 %167
    %169 = vmax.xlane.f32.xlu0 %v79
    %v170 = vpop.xlane.xlu0 %169
    %171 = vmax.xlane.f32.xlu0 %v80
    %v172 = vpop.xlane.xlu0 %171
    %173 = vmax.xlane.f32.xlu0 %v81
    %v174 = vpop.xlane.xlu0 %173
    %175 = vmax.xlane.f32.xlu0 %v82
    %v176 = vpop.xlane.xlu0 %175
    %177 = vmax.xlane.f32.xlu0 %v83
    %v178 = vpop.xlane.xlu0 %177
    %179 = vmax.xlane.f32.xlu0 %v84
    %v180 = vpop.xlane.xlu0 %179
    %181 = vmax.xlane.f32.xlu0 %v85
    %v182 = vpop.xlane.xlu0 %181
    %183 = vmax.xlane.f32.xlu0 %v86
    %v184 = vpop.xlane.xlu0 %183
    %185 = vmax.xlane.f32.xlu0 %v87
    %v186 = vpop.xlane.xlu0 %185
    %187 = vmax.xlane.f32.xlu0 %v88
    %v188 = vpop.xlane.xlu0 %187
    %189 = vmax.xlane.f32.xlu0 %v89
    %v190 = vpop.xlane.xlu0 %189
    %191 = vmax.xlane.f32.xlu0 %v90
    %v192 = vpop.xlane.xlu0 %191
    %193 = vmax.xlane.f32.xlu0 %v91
    %v194 = vpop.xlane.xlu0 %193
    %195 = vmax.xlane.f32.xlu0 %v92
    %v196 = vpop.xlane.xlu0 %195
    %197 = vmax.xlane.f32.xlu0 %v93
    %v198 = vpop.xlane.xlu0 %197
    %199 = vmax.xlane.f32.xlu0 %v94
    %v200 = vpop.xlane.xlu0 %199
    %201 = vmax.xlane.f32.xlu0 %v95
    %v202 = vpop.xlane.xlu0 %201
    %203 = vmax.xlane.f32.xlu0 %v96
    %v204 = vpop.xlane.xlu0 %203
    %205 = vmax.xlane.f32.xlu0 %v97
    %v206 = vpop.xlane.xlu0 %205
    %207 = vmax.xlane.f32.xlu0 %v98
    %v208 = vpop.xlane.xlu0 %207
    %209 = vmax.xlane.f32.xlu0 %v99
    %v210 = vpop.xlane.xlu0 %209
    %211 = vmax.xlane.f32.xlu0 %v100
    %v212 = vpop.xlane.xlu0 %211
    %213 = vmax.xlane.f32.xlu0 %v101
    %v214 = vpop.xlane.xlu0 %213
    %vm215 = vcmask 1043456
    %v216 = vsel %vm215, %v102, -inf
    %217 = vmax.xlane.f32.xlu0 %v216
    %v218 = vpop.xlane.xlu0 %217
    %v219 = vsub.f32 %v65, %v142
    %v220 = vsub.f32 %v66, %v144
    %v221 = vsub.f32 %v67, %v146
    %v222 = vsub.f32 %v68, %v148
    %v223 = vsub.f32 %v69, %v150
    %v224 = vsub.f32 %v70, %v152
    %v225 = vsub.f32 %v71, %v154
    %v226 = vsub.f32 %v72, %v156
    %v227 = vsub.f32 %v73, %v158
    %v228 = vsub.f32 %v74, %v160
    %v229 = vsub.f32 %v75, %v162
    %v230 = vsub.f32 %v76, %v164
    %v231 = vsub.f32 %v77, %v166
    %v232 = vsub.f32 %v78, %v168
    %v233 = vsub.f32 %v79, %v170
    %v234 = vsub.f32 %v80, %v172
    %v235 = vsub.f32 %v81, %v174
    %v236 = vsub.f32 %v82, %v176
    %v237 = vsub.f32 %v83, %v178
    %v238 = vsub.f32 %v84, %v180
    %v239 = vsub.f32 %v85, %v182
    %v240 = vsub.f32 %v86, %v184
    %v241 = vsub.f32 %v87, %v186
    %v242 = vsub.f32 %v88, %v188
    %v243 = vsub.f32 %v89, %v190
    %v244 = vsub.f32 %v90, %v192
    %v245 = vsub.f32 %v91, %v194
    %v246 = vsub.f32 %v92, %v196
    %v247 = vsub.f32 %v93, %v198
    %v248 = vsub.f32 %v94, %v200
    %v249 = vsub.f32 %v95, %v202
    %v250 = vsub.f32 %v96, %v204
    %v251 = vsub.f32 %v97, %v206
    %v252 = vsub.f32 %v98, %v208
    %v253 = vsub.f32 %v99, %v210
    %v254 = vsub.f32 %v100, %v212
    %v255 = vsub.f32 %v101, %v214
    %v256 = vsub.f32 %v102, %v218
    %v257 = vmul.f32 %v219, 1.442695
    %v258 = vpow.pop %v257
    %v259 = vmul.f32 %v220, 1.442695
    %v260 = vpow.pop %v259
    %v261 = vmul.f32 %v221, 1.442695
    %v262 = vpow.pop %v261
    %v263 = vmul.f32 %v222, 1.442695
    %v264 = vpow.pop %v263
    %v265 = vmul.f32 %v223, 1.442695
    %v266 = vpow.pop %v265
    %v267 = vmul.f32 %v224, 1.442695
    %v268 = vpow.pop %v267
    %v269 = vmul.f32 %v225, 1.442695
    %v270 = vpow.pop %v269
    %v271 = vmul.f32 %v226, 1.442695
    %v272 = vpow.pop %v271
    %v273 = vmul.f32 %v227, 1.442695
    %v274 = vpow.pop %v273
    %v275 = vmul.f32 %v228, 1.442695
    %v276 = vpow.pop %v275
    %v277 = vmul.f32 %v229, 1.442695
    %v278 = vpow.pop %v277
    %v279 = vmul.f32 %v230, 1.442695
    %v280 = vpow.pop %v279
    %v281 = vmul.f32 %v231, 1.442695
    %v282 = vpow.pop %v281
    %v283 = vmul.f32 %v232, 1.442695
    %v284 = vpow.pop %v283
    %v285 = vmul.f32 %v233, 1.442695
    %v286 = vpow.pop %v285
    %v287 = vmul.f32 %v234, 1.442695
    %v288 = vpow.pop %v287
    %v289 = vmul.f32 %v235, 1.442695
    %v290 = vpow.pop %v289
    %v291 = vmul.f32 %v236, 1.442695
    %v292 = vpow.pop %v291
    %v293 = vmul.f32 %v237, 1.442695
    %v294 = vpow.pop %v293
    %v295 = vmul.f32 %v238, 1.442695
    %v296 = vpow.pop %v295
    %v297 = vmul.f32 %v239, 1.442695
    %v298 = vpow.pop %v297
    %v299 = vmul.f32 %v240, 1.442695
    %v300 = vpow.pop %v299
    %v301 = vmul.f32 %v241, 1.442695
    %v302 = vpow.pop %v301
    %v303 = vmul.f32 %v242, 1.442695
    %v304 = vpow.pop %v303
    %v305 = vmul.f32 %v243, 1.442695
    %v306 = vpow.pop %v305
    %v307 = vmul.f32 %v244, 1.442695
    %v308 = vpow.pop %v307
    %v309 = vmul.f32 %v245, 1.442695
    %v310 = vpow.pop %v309
    %v311 = vmul.f32 %v246, 1.442695
    %v312 = vpow.pop %v311
    %v313 = vmul.f32 %v247, 1.442695
    %v314 = vpow.pop %v313
    %v315 = vmul.f32 %v248, 1.442695
    %v316 = vpow.pop %v315
    %v317 = vmul.f32 %v249, 1.442695
    %v318 = vpow.pop %v317
    %v319 = vmul.f32 %v250, 1.442695
    %v320 = vpow.pop %v319
    %v321 = vmul.f32 %v251, 1.442695
    %v322 = vpow.pop %v321
    %v323 = vmul.f32 %v252, 1.442695
    %v324 = vpow.pop %v323
    %v325 = vmul.f32 %v253, 1.442695
    %v326 = vpow.pop %v325
    %v327 = vmul.f32 %v254, 1.442695
    %v328 = vpow.pop %v327
    %v329 = vmul.f32 %v255, 1.442695
    %v330 = vpow.pop %v329
    %v331 = vmul.f32 %v256, 1.442695
    %v332 = vpow.pop %v331
    %333 = vadd.xlane.f32.xlu0 %v258
    %v334 = vpop.xlane.xlu0 %333
    %335 = vadd.xlane.f32.xlu0 %v260
    %v336 = vpop.xlane.xlu0 %335
    %337 = vadd.xlane.f32.xlu0 %v262
    %v338 = vpop.xlane.xlu0 %337
    %339 = vadd.xlane.f32.xlu0 %v264
    %v340 = vpop.xlane.xlu0 %339
    %341 = vadd.xlane.f32.xlu0 %v266
    %v342 = vpop.xlane.xlu0 %341
    %343 = vadd.xlane.f32.xlu0 %v268
    %v344 = vpop.xlane.xlu0 %343
    %345 = vadd.xlane.f32.xlu0 %v270
    %v346 = vpop.xlane.xlu0 %345
    %347 = vadd.xlane.f32.xlu0 %v272
    %v348 = vpop.xlane.xlu0 %347
    %349 = vadd.xlane.f32.xlu0 %v274
    %v350 = vpop.xlane.xlu0 %349
    %351 = vadd.xlane.f32.xlu0 %v276
    %v352 = vpop.xlane.xlu0 %351
    %353 = vadd.xlane.f32.xlu0 %v278
    %v354 = vpop.xlane.xlu0 %353
    %355 = vadd.xlane.f32.xlu0 %v280
    %v356 = vpop.xlane.xlu0 %355
    %357 = vadd.xlane.f32.xlu0 %v282
    %v358 = vpop.xlane.xlu0 %357
    %359 = vadd.xlane.f32.xlu0 %v284
    %v360 = vpop.xlane.xlu0 %359
    %361 = vadd.xlane.f32.xlu0 %v286
    %v362 = vpop.xlane.xlu0 %361
    %363 = vadd.xlane.f32.xlu0 %v288
    %v364 = vpop.xlane.xlu0 %363
    %365 = vadd.xlane.f32.xlu0 %v290
    %v366 = vpop.xlane.xlu0 %365
    %367 = vadd.xlane.f32.xlu0 %v292
    %v368 = vpop.xlane.xlu0 %367
    %369 = vadd.xlane.f32.xlu0 %v294
    %v370 = vpop.xlane.xlu0 %369
    %371 = vadd.xlane.f32.xlu0 %v296
    %v372 = vpop.xlane.xlu0 %371
    %373 = vadd.xlane.f32.xlu0 %v298
    %v374 = vpop.xlane.xlu0 %373
    %375 = vadd.xlane.f32.xlu0 %v300
    %v376 = vpop.xlane.xlu0 %375
    %377 = vadd.xlane.f32.xlu0 %v302
    %v378 = vpop.xlane.xlu0 %377
    %379 = vadd.xlane.f32.xlu0 %v304
    %v380 = vpop.xlane.xlu0 %379
    %381 = vadd.xlane.f32.xlu0 %v306
    %v382 = vpop.xlane.xlu0 %381
    %383 = vadd.xlane.f32.xlu0 %v308
    %v384 = vpop.xlane.xlu0 %383
    %385 = vadd.xlane.f32.xlu0 %v310
    %v386 = vpop.xlane.xlu0 %385
    %387 = vadd.xlane.f32.xlu0 %v312
    %v388 = vpop.xlane.xlu0 %387
    %389 = vadd.xlane.f32.xlu0 %v314
    %v390 = vpop.xlane.xlu0 %389
    %391 = vadd.xlane.f32.xlu0 %v316
    %v392 = vpop.xlane.xlu0 %391
    %393 = vadd.xlane.f32.xlu0 %v318
    %v394 = vpop.xlane.xlu0 %393
    %395 = vadd.xlane.f32.xlu0 %v320
    %v396 = vpop.xlane.xlu0 %395
    %397 = vadd.xlane.f32.xlu0 %v322
    %v398 = vpop.xlane.xlu0 %397
    %399 = vadd.xlane.f32.xlu0 %v324
    %v400 = vpop.xlane.xlu0 %399
    %401 = vadd.xlane.f32.xlu0 %v326
    %v402 = vpop.xlane.xlu0 %401
    %403 = vadd.xlane.f32.xlu0 %v328
    %v404 = vpop.xlane.xlu0 %403
    %405 = vadd.xlane.f32.xlu0 %v330
    %v406 = vpop.xlane.xlu0 %405
    %v407 = vsel %vm215, %v332, 0.0
    %408 = vadd.xlane.f32.xlu0 %v407
    %v409 = vpop.xlane.xlu0 %408
    %v410 = vlog2.pop %v334
    %v411 = vmul.f32 %v410, 0.6931472
    %v412 = vlog2.pop %v336
    %v413 = vmul.f32 %v412, 0.6931472
    %v414 = vlog2.pop %v338
    %v415 = vmul.f32 %v414, 0.6931472
    %v416 = vlog2.pop %v340
    %v417 = vmul.f32 %v416, 0.6931472
    %v418 = vlog2.pop %v342
    %v419 = vmul.f32 %v418, 0.6931472
    %v420 = vlog2.pop %v344
    %v421 = vmul.f32 %v420, 0.6931472
    %v422 = vlog2.pop %v346
    %v423 = vmul.f32 %v422, 0.6931472
    %v424 = vlog2.pop %v348
    %v425 = vmul.f32 %v424, 0.6931472
    %v426 = vlog2.pop %v350
    %v427 = vmul.f32 %v426, 0.6931472
    %v428 = vlog2.pop %v352
    %v429 = vmul.f32 %v428, 0.6931472
    %v430 = vlog2.pop %v354
    %v431 = vmul.f32 %v430, 0.6931472
    %v432 = vlog2.pop %v356
    %v433 = vmul.f32 %v432, 0.6931472
    %v434 = vlog2.pop %v358
    %v435 = vmul.f32 %v434, 0.6931472
    %v436 = vlog2.pop %v360
    %v437 = vmul.f32 %v436, 0.6931472
    %v438 = vlog2.pop %v362
    %v439 = vmul.f32 %v438, 0.6931472
    %v440 = vlog2.pop %v364
    %v441 = vmul.f32 %v440, 0.6931472
    %v442 = vlog2.pop %v366
    %v443 = vmul.f32 %v442, 0.6931472
    %v444 = vlog2.pop %v368
    %v445 = vmul.f32 %v444, 0.6931472
    %v446 = vlog2.pop %v370
    %v447 = vmul.f32 %v446, 0.6931472
    %v448 = vlog2.pop %v372
    %v449 = vmul.f32 %v448, 0.6931472
    %v450 = vlog2.pop %v374
    %v451 = vmul.f32 %v450, 0.6931472
    %v452 = vlog2.pop %v376
    %v453 = vmul.f32 %v452, 0.6931472
    %v454 = vlog2.pop %v378
    %v455 = vmul.f32 %v454, 0.6931472
    %v456 = vlog2.pop %v380
    %v457 = vmul.f32 %v456, 0.6931472
    %v458 = vlog2.pop %v382
    %v459 = vmul.f32 %v458, 0.6931472
    %v460 = vlog2.pop %v384
    %v461 = vmul.f32 %v460, 0.6931472
    %v462 = vlog2.pop %v386
    %v463 = vmul.f32 %v462, 0.6931472
    %v464 = vlog2.pop %v388
    %v465 = vmul.f32 %v464, 0.6931472
    %v466 = vlog2.pop %v390
    %v467 = vmul.f32 %v466, 0.6931472
    %v468 = vlog2.pop %v392
    %v469 = vmul.f32 %v468, 0.6931472
    %v470 = vlog2.pop %v394
    %v471 = vmul.f32 %v470, 0.6931472
    %v472 = vlog2.pop %v396
    %v473 = vmul.f32 %v472, 0.6931472
    %v474 = vlog2.pop %v398
    %v475 = vmul.f32 %v474, 0.6931472
    %v476 = vlog2.pop %v400
    %v477 = vmul.f32 %v476, 0.6931472
    %v478 = vlog2.pop %v402
    %v479 = vmul.f32 %v478, 0.6931472
    %v480 = vlog2.pop %v404
    %v481 = vmul.f32 %v480, 0.6931472
    %v482 = vlog2.pop %v406
    %v483 = vmul.f32 %v482, 0.6931472
    %v484 = vlog2.pop %v409
    %v485 = vmul.f32 %v484, 0.6931472
    %v486 = vlaneseq
    %v487 = vand.u32 %v486, 127
    %488 = vset.pattern.permute.xlu0 0
    %489 = vperm.xlu0 %488, %v103
    %v490 = vpop.permute.xlu0 %489
    %491 = vset.pattern.permute.xlu0 0
    %492 = vperm.xlu0 %491, %v104
    %v493 = vpop.permute.xlu0 %492
    %494 = vset.pattern.permute.xlu0 0
    %495 = vperm.xlu0 %494, %v105
    %v496 = vpop.permute.xlu0 %495
    %497 = vset.pattern.permute.xlu0 0
    %498 = vperm.xlu0 %497, %v106
    %v499 = vpop.permute.xlu0 %498
    %500 = vset.pattern.permute.xlu0 0
    %501 = vperm.xlu0 %500, %v107
    %v502 = vpop.permute.xlu0 %501
    %503 = vset.pattern.permute.xlu0 0
    %504 = vperm.xlu0 %503, %v108
    %v505 = vpop.permute.xlu0 %504
    %506 = vset.pattern.permute.xlu0 0
    %507 = vperm.xlu0 %506, %v109
    %v508 = vpop.permute.xlu0 %507
    %509 = vset.pattern.permute.xlu0 0
    %510 = vperm.xlu0 %509, %v110
    %v511 = vpop.permute.xlu0 %510
    %512 = vset.pattern.permute.xlu0 0
    %513 = vperm.xlu0 %512, %v111
    %v514 = vpop.permute.xlu0 %513
    %515 = vset.pattern.permute.xlu0 0
    %516 = vperm.xlu0 %515, %v112
    %v517 = vpop.permute.xlu0 %516
    %518 = vset.pattern.permute.xlu0 0
    %519 = vperm.xlu0 %518, %v113
    %v520 = vpop.permute.xlu0 %519
    %521 = vset.pattern.permute.xlu0 0
    %522 = vperm.xlu0 %521, %v114
    %v523 = vpop.permute.xlu0 %522
    %524 = vset.pattern.permute.xlu0 0
    %525 = vperm.xlu0 %524, %v115
    %v526 = vpop.permute.xlu0 %525
    %527 = vset.pattern.permute.xlu0 0
    %528 = vperm.xlu0 %527, %v116
    %v529 = vpop.permute.xlu0 %528
    %530 = vset.pattern.permute.xlu0 0
    %531 = vperm.xlu0 %530, %v117
    %v532 = vpop.permute.xlu0 %531
    %533 = vset.pattern.permute.xlu0 0
    %534 = vperm.xlu0 %533, %v118
    %v535 = vpop.permute.xlu0 %534
    %536 = vset.pattern.permute.xlu0 0
    %537 = vperm.xlu0 %536, %v119
    %v538 = vpop.permute.xlu0 %537
    %539 = vset.pattern.permute.xlu0 0
    %540 = vperm.xlu0 %539, %v120
    %v541 = vpop.permute.xlu0 %540
    %542 = vset.pattern.permute.xlu0 0
    %543 = vperm.xlu0 %542, %v121
    %v544 = vpop.permute.xlu0 %543
    %545 = vset.pattern.permute.xlu0 0
    %546 = vperm.xlu0 %545, %v122
    %v547 = vpop.permute.xlu0 %546
    %548 = vset.pattern.permute.xlu0 0
    %549 = vperm.xlu0 %548, %v123
    %v550 = vpop.permute.xlu0 %549
    %551 = vset.pattern.permute.xlu0 0
    %552 = vperm.xlu0 %551, %v124
    %v553 = vpop.permute.xlu0 %552
    %554 = vset.pattern.permute.xlu0 0
    %555 = vperm.xlu0 %554, %v125
    %v556 = vpop.permute.xlu0 %555
    %557 = vset.pattern.permute.xlu0 0
    %558 = vperm.xlu0 %557, %v126
    %v559 = vpop.permute.xlu0 %558
    %560 = vset.pattern.permute.xlu0 0
    %561 = vperm.xlu0 %560, %v127
    %v562 = vpop.permute.xlu0 %561
    %563 = vset.pattern.permute.xlu0 0
    %564 = vperm.xlu0 %563, %v128
    %v565 = vpop.permute.xlu0 %564
    %566 = vset.pattern.permute.xlu0 0
    %567 = vperm.xlu0 %566, %v129
    %v568 = vpop.permute.xlu0 %567
    %569 = vset.pattern.permute.xlu0 0
    %570 = vperm.xlu0 %569, %v130
    %v571 = vpop.permute.xlu0 %570
    %572 = vset.pattern.permute.xlu0 0
    %573 = vperm.xlu0 %572, %v131
    %v574 = vpop.permute.xlu0 %573
    %575 = vset.pattern.permute.xlu0 0
    %576 = vperm.xlu0 %575, %v132
    %v577 = vpop.permute.xlu0 %576
    %578 = vset.pattern.permute.xlu0 0
    %579 = vperm.xlu0 %578, %v133
    %v580 = vpop.permute.xlu0 %579
    %581 = vset.pattern.permute.xlu0 0
    %582 = vperm.xlu0 %581, %v134
    %v583 = vpop.permute.xlu0 %582
    %584 = vset.pattern.permute.xlu0 0
    %585 = vperm.xlu0 %584, %v135
    %v586 = vpop.permute.xlu0 %585
    %587 = vset.pattern.permute.xlu0 0
    %588 = vperm.xlu0 %587, %v136
    %v589 = vpop.permute.xlu0 %588
    %590 = vset.pattern.permute.xlu0 0
    %591 = vperm.xlu0 %590, %v137
    %v592 = vpop.permute.xlu0 %591
    %593 = vset.pattern.permute.xlu0 0
    %594 = vperm.xlu0 %593, %v138
    %v595 = vpop.permute.xlu0 %594
    %596 = vset.pattern.permute.xlu0 0
    %597 = vperm.xlu0 %596, %v139
    %v598 = vpop.permute.xlu0 %597
    %599 = vset.pattern.permute.xlu0 0
    %600 = vperm.xlu0 %599, %v140
    %v601 = vpop.permute.xlu0 %600
    %vm602 = vcmp.eq.s32.totalorder %v487, %v490
    %vm603 = vcmp.eq.s32.totalorder %v487, %v493
    %vm604 = vcmp.eq.s32.totalorder %v487, %v496
    %vm605 = vcmp.eq.s32.totalorder %v487, %v499
    %vm606 = vcmp.eq.s32.totalorder %v487, %v502
    %vm607 = vcmp.eq.s32.totalorder %v487, %v505
    %vm608 = vcmp.eq.s32.totalorder %v487, %v508
    %vm609 = vcmp.eq.s32.totalorder %v487, %v511
    %vm610 = vcmp.eq.s32.totalorder %v487, %v514
    %vm611 = vcmp.eq.s32.totalorder %v487, %v517
    %vm612 = vcmp.eq.s32.totalorder %v487, %v520
    %vm613 = vcmp.eq.s32.totalorder %v487, %v523
    %vm614 = vcmp.eq.s32.totalorder %v487, %v526
    %vm615 = vcmp.eq.s32.totalorder %v487, %v529
    %vm616 = vcmp.eq.s32.totalorder %v487, %v532
    %vm617 = vcmp.eq.s32.totalorder %v487, %v535
    %vm618 = vcmp.eq.s32.totalorder %v487, %v538
    %vm619 = vcmp.eq.s32.totalorder %v487, %v541
    %vm620 = vcmp.eq.s32.totalorder %v487, %v544
    %vm621 = vcmp.eq.s32.totalorder %v487, %v547
    %vm622 = vcmp.eq.s32.totalorder %v487, %v550
    %vm623 = vcmp.eq.s32.totalorder %v487, %v553
    %vm624 = vcmp.eq.s32.totalorder %v487, %v556
    %vm625 = vcmp.eq.s32.totalorder %v487, %v559
    %vm626 = vcmp.eq.s32.totalorder %v487, %v562
    %vm627 = vcmp.eq.s32.totalorder %v487, %v565
    %vm628 = vcmp.eq.s32.totalorder %v487, %v568
    %vm629 = vcmp.eq.s32.totalorder %v487, %v571
    %vm630 = vcmp.eq.s32.totalorder %v487, %v574
    %vm631 = vcmp.eq.s32.totalorder %v487, %v577
    %vm632 = vcmp.eq.s32.totalorder %v487, %v580
    %vm633 = vcmp.eq.s32.totalorder %v487, %v583
    %vm634 = vcmp.eq.s32.totalorder %v487, %v586
    %vm635 = vcmp.eq.s32.totalorder %v487, %v589
    %vm636 = vcmp.eq.s32.totalorder %v487, %v592
    %vm637 = vcmp.eq.s32.totalorder %v487, %v595
    %vm638 = vcmp.eq.s32.totalorder %v487, %v598
    %vm639 = vcmp.eq.s32.totalorder %v487, %v601
    %v640 = vsel %vm602, %v219, 0.0
    %v641 = vsel %vm603, %v220, 0.0
    %v642 = vsel %vm604, %v221, 0.0
    %v643 = vsel %vm605, %v222, 0.0
    %v644 = vsel %vm606, %v223, 0.0
    %v645 = vsel %vm607, %v224, 0.0
    %v646 = vsel %vm608, %v225, 0.0
    %v647 = vsel %vm609, %v226, 0.0
    %v648 = vsel %vm610, %v227, 0.0
    %v649 = vsel %vm611, %v228, 0.0
    %v650 = vsel %vm612, %v229, 0.0
    %v651 = vsel %vm613, %v230, 0.0
    %v652 = vsel %vm614, %v231, 0.0
    %v653 = vsel %vm615, %v232, 0.0
    %v654 = vsel %vm616, %v233, 0.0
    %v655 = vsel %vm617, %v234, 0.0
    %v656 = vsel %vm618, %v235, 0.0
    %v657 = vsel %vm619, %v236, 0.0
    %v658 = vsel %vm620, %v237, 0.0
    %v659 = vsel %vm621, %v238, 0.0
    %v660 = vsel %vm622, %v239, 0.0
    %v661 = vsel %vm623, %v240, 0.0
    %v662 = vsel %vm624, %v241, 0.0
    %v663 = vsel %vm625, %v242, 0.0
    %v664 = vsel %vm626, %v243, 0.0
    %v665 = vsel %vm627, %v244, 0.0
    %v666 = vsel %vm628, %v245, 0.0
    %v667 = vsel %vm629, %v246, 0.0
    %v668 = vsel %vm630, %v247, 0.0
    %v669 = vsel %vm631, %v248, 0.0
    %v670 = vsel %vm632, %v249, 0.0
    %v671 = vsel %vm633, %v250, 0.0
    %v672 = vsel %vm634, %v251, 0.0
    %v673 = vsel %vm635, %v252, 0.0
    %v674 = vsel %vm636, %v253, 0.0
    %v675 = vsel %vm637, %v254, 0.0
    %v676 = vsel %vm638, %v255, 0.0
    %v677 = vsel %vm639, %v256, 0.0
    %678 = vadd.xlane.f32.xlu0 %v640
    %v679 = vpop.xlane.xlu0 %678
    %680 = vadd.xlane.f32.xlu0 %v641
    %v681 = vpop.xlane.xlu0 %680
    %682 = vadd.xlane.f32.xlu0 %v642
    %v683 = vpop.xlane.xlu0 %682
    %684 = vadd.xlane.f32.xlu0 %v643
    %v685 = vpop.xlane.xlu0 %684
    %686 = vadd.xlane.f32.xlu0 %v644
    %v687 = vpop.xlane.xlu0 %686
    %688 = vadd.xlane.f32.xlu0 %v645
    %v689 = vpop.xlane.xlu0 %688
    %690 = vadd.xlane.f32.xlu0 %v646
    %v691 = vpop.xlane.xlu0 %690
    %692 = vadd.xlane.f32.xlu0 %v647
    %v693 = vpop.xlane.xlu0 %692
    %694 = vadd.xlane.f32.xlu0 %v648
    %v695 = vpop.xlane.xlu0 %694
    %696 = vadd.xlane.f32.xlu0 %v649
    %v697 = vpop.xlane.xlu0 %696
    %698 = vadd.xlane.f32.xlu0 %v650
    %v699 = vpop.xlane.xlu0 %698
    %700 = vadd.xlane.f32.xlu0 %v651
    %v701 = vpop.xlane.xlu0 %700
    %702 = vadd.xlane.f32.xlu0 %v652
    %v703 = vpop.xlane.xlu0 %702
    %704 = vadd.xlane.f32.xlu0 %v653
    %v705 = vpop.xlane.xlu0 %704
    %706 = vadd.xlane.f32.xlu0 %v654
    %v707 = vpop.xlane.xlu0 %706
    %708 = vadd.xlane.f32.xlu0 %v655
    %v709 = vpop.xlane.xlu0 %708
    %710 = vadd.xlane.f32.xlu0 %v656
    %v711 = vpop.xlane.xlu0 %710
    %712 = vadd.xlane.f32.xlu0 %v657
    %v713 = vpop.xlane.xlu0 %712
    %714 = vadd.xlane.f32.xlu0 %v658
    %v715 = vpop.xlane.xlu0 %714
    %716 = vadd.xlane.f32.xlu0 %v659
    %v717 = vpop.xlane.xlu0 %716
    %718 = vadd.xlane.f32.xlu0 %v660
    %v719 = vpop.xlane.xlu0 %718
    %720 = vadd.xlane.f32.xlu0 %v661
    %v721 = vpop.xlane.xlu0 %720
    %722 = vadd.xlane.f32.xlu0 %v662
    %v723 = vpop.xlane.xlu0 %722
    %724 = vadd.xlane.f32.xlu0 %v663
    %v725 = vpop.xlane.xlu0 %724
    %726 = vadd.xlane.f32.xlu0 %v664
    %v727 = vpop.xlane.xlu0 %726
    %728 = vadd.xlane.f32.xlu0 %v665
    %v729 = vpop.xlane.xlu0 %728
    %730 = vadd.xlane.f32.xlu0 %v666
    %v731 = vpop.xlane.xlu0 %730
    %732 = vadd.xlane.f32.xlu0 %v667
    %v733 = vpop.xlane.xlu0 %732
    %734 = vadd.xlane.f32.xlu0 %v668
    %v735 = vpop.xlane.xlu0 %734
    %736 = vadd.xlane.f32.xlu0 %v669
    %v737 = vpop.xlane.xlu0 %736
    %738 = vadd.xlane.f32.xlu0 %v670
    %v739 = vpop.xlane.xlu0 %738
    %740 = vadd.xlane.f32.xlu0 %v671
    %v741 = vpop.xlane.xlu0 %740
    %742 = vadd.xlane.f32.xlu0 %v672
    %v743 = vpop.xlane.xlu0 %742
    %744 = vadd.xlane.f32.xlu0 %v673
    %v745 = vpop.xlane.xlu0 %744
    %746 = vadd.xlane.f32.xlu0 %v674
    %v747 = vpop.xlane.xlu0 %746
    %748 = vadd.xlane.f32.xlu0 %v675
    %v749 = vpop.xlane.xlu0 %748
    %750 = vadd.xlane.f32.xlu0 %v676
    %v751 = vpop.xlane.xlu0 %750
    %v752 = vsel %vm215, %v677, 0.0
    %753 = vadd.xlane.f32.xlu0 %v752
    %v754 = vpop.xlane.xlu0 %753
    %vm755 = vcmp.ge.s32.totalorder %v103, 0
    %vm756 = vcmp.ge.s32.totalorder %v104, 0
    %vm757 = vcmp.ge.s32.totalorder %v105, 0
    %vm758 = vcmp.ge.s32.totalorder %v106, 0
    %vm759 = vcmp.ge.s32.totalorder %v107, 0
    %vm760 = vcmp.ge.s32.totalorder %v108, 0
    %vm761 = vcmp.ge.s32.totalorder %v109, 0
    %vm762 = vcmp.ge.s32.totalorder %v110, 0
    %vm763 = vcmp.ge.s32.totalorder %v111, 0
    %vm764 = vcmp.ge.s32.totalorder %v112, 0
    %vm765 = vcmp.ge.s32.totalorder %v113, 0
    %vm766 = vcmp.ge.s32.totalorder %v114, 0
    %vm767 = vcmp.ge.s32.totalorder %v115, 0
    %vm768 = vcmp.ge.s32.totalorder %v116, 0
    %vm769 = vcmp.ge.s32.totalorder %v117, 0
    %vm770 = vcmp.ge.s32.totalorder %v118, 0
    %vm771 = vcmp.ge.s32.totalorder %v119, 0
    %vm772 = vcmp.ge.s32.totalorder %v120, 0
    %vm773 = vcmp.ge.s32.totalorder %v121, 0
    %vm774 = vcmp.ge.s32.totalorder %v122, 0
    %vm775 = vcmp.ge.s32.totalorder %v123, 0
    %vm776 = vcmp.ge.s32.totalorder %v124, 0
    %vm777 = vcmp.ge.s32.totalorder %v125, 0
    %vm778 = vcmp.ge.s32.totalorder %v126, 0
    %vm779 = vcmp.ge.s32.totalorder %v127, 0
    %vm780 = vcmp.ge.s32.totalorder %v128, 0
    %vm781 = vcmp.ge.s32.totalorder %v129, 0
    %vm782 = vcmp.ge.s32.totalorder %v130, 0
    %vm783 = vcmp.ge.s32.totalorder %v131, 0
    %vm784 = vcmp.ge.s32.totalorder %v132, 0
    %vm785 = vcmp.ge.s32.totalorder %v133, 0
    %vm786 = vcmp.ge.s32.totalorder %v134, 0
    %vm787 = vcmp.ge.s32.totalorder %v135, 0
    %vm788 = vcmp.ge.s32.totalorder %v136, 0
    %vm789 = vcmp.ge.s32.totalorder %v137, 0
    %vm790 = vcmp.ge.s32.totalorder %v138, 0
    %vm791 = vcmp.ge.s32.totalorder %v139, 0
    %vm792 = vcmp.ge.s32.totalorder %v140, 0
    %v793 = vsub.f32 %v679, %v411
    %v794 = vsub.f32 %v681, %v413
    %v795 = vsub.f32 %v683, %v415
    %v796 = vsub.f32 %v685, %v417
    %v797 = vsub.f32 %v687, %v419
    %v798 = vsub.f32 %v689, %v421
    %v799 = vsub.f32 %v691, %v423
    %v800 = vsub.f32 %v693, %v425
    %v801 = vsub.f32 %v695, %v427
    %v802 = vsub.f32 %v697, %v429
    %v803 = vsub.f32 %v699, %v431
    %v804 = vsub.f32 %v701, %v433
    %v805 = vsub.f32 %v703, %v435
    %v806 = vsub.f32 %v705, %v437
    %v807 = vsub.f32 %v707, %v439
    %v808 = vsub.f32 %v709, %v441
    %v809 = vsub.f32 %v711, %v443
    %v810 = vsub.f32 %v713, %v445
    %v811 = vsub.f32 %v715, %v447
    %v812 = vsub.f32 %v717, %v449
    %v813 = vsub.f32 %v719, %v451
    %v814 = vsub.f32 %v721, %v453
    %v815 = vsub.f32 %v723, %v455
    %v816 = vsub.f32 %v725, %v457
    %v817 = vsub.f32 %v727, %v459
    %v818 = vsub.f32 %v729, %v461
    %v819 = vsub.f32 %v731, %v463
    %v820 = vsub.f32 %v733, %v465
    %v821 = vsub.f32 %v735, %v467
    %v822 = vsub.f32 %v737, %v469
    %v823 = vsub.f32 %v739, %v471
    %v824 = vsub.f32 %v741, %v473
    %v825 = vsub.f32 %v743, %v475
    %v826 = vsub.f32 %v745, %v477
    %v827 = vsub.f32 %v747, %v479
    %v828 = vsub.f32 %v749, %v481
    %v829 = vsub.f32 %v751, %v483
    %v830 = vsub.f32 %v754, %v485
    %v831 = vsel %vm755, %v793, 0.0
    %v832 = vsel %vm756, %v794, 0.0
    %v833 = vsel %vm757, %v795, 0.0
    %v834 = vsel %vm758, %v796, 0.0
    %v835 = vsel %vm759, %v797, 0.0
    %v836 = vsel %vm760, %v798, 0.0
    %v837 = vsel %vm761, %v799, 0.0
    %v838 = vsel %vm762, %v800, 0.0
    %v839 = vsel %vm763, %v801, 0.0
    %v840 = vsel %vm764, %v802, 0.0
    %v841 = vsel %vm765, %v803, 0.0
    %v842 = vsel %vm766, %v804, 0.0
    %v843 = vsel %vm767, %v805, 0.0
    %v844 = vsel %vm768, %v806, 0.0
    %v845 = vsel %vm769, %v807, 0.0
    %v846 = vsel %vm770, %v808, 0.0
    %v847 = vsel %vm771, %v809, 0.0
    %v848 = vsel %vm772, %v810, 0.0
    %v849 = vsel %vm773, %v811, 0.0
    %v850 = vsel %vm774, %v812, 0.0
    %v851 = vsel %vm775, %v813, 0.0
    %v852 = vsel %vm776, %v814, 0.0
    %v853 = vsel %vm777, %v815, 0.0
    %v854 = vsel %vm778, %v816, 0.0
    %v855 = vsel %vm779, %v817, 0.0
    %v856 = vsel %vm780, %v818, 0.0
    %v857 = vsel %vm781, %v819, 0.0
    %v858 = vsel %vm782, %v820, 0.0
    %v859 = vsel %vm783, %v821, 0.0
    %v860 = vsel %vm784, %v822, 0.0
    %v861 = vsel %vm785, %v823, 0.0
    %v862 = vsel %vm786, %v824, 0.0
    %v863 = vsel %vm787, %v825, 0.0
    %v864 = vsel %vm788, %v826, 0.0
    %v865 = vsel %vm789, %v827, 0.0
    %v866 = vsel %vm790, %v828, 0.0
    %v867 = vsel %vm791, %v829, 0.0
    %v868 = vsel %vm792, %v830, 0.0
    %v869 = vmul.f32 %v831, 1.442695
    %v870 = vpow.pop %v869
    %v871 = vmul.f32 %v832, 1.442695
    %v872 = vpow.pop %v871
    %v873 = vmul.f32 %v833, 1.442695
    %v874 = vpow.pop %v873
    %v875 = vmul.f32 %v834, 1.442695
    %v876 = vpow.pop %v875
    %v877 = vmul.f32 %v835, 1.442695
    %v878 = vpow.pop %v877
    %v879 = vmul.f32 %v836, 1.442695
    %v880 = vpow.pop %v879
    %v881 = vmul.f32 %v837, 1.442695
    %v882 = vpow.pop %v881
    %v883 = vmul.f32 %v838, 1.442695
    %v884 = vpow.pop %v883
    %v885 = vmul.f32 %v839, 1.442695
    %v886 = vpow.pop %v885
    %v887 = vmul.f32 %v840, 1.442695
    %v888 = vpow.pop %v887
    %v889 = vmul.f32 %v841, 1.442695
    %v890 = vpow.pop %v889
    %v891 = vmul.f32 %v842, 1.442695
    %v892 = vpow.pop %v891
    %v893 = vmul.f32 %v843, 1.442695
    %v894 = vpow.pop %v893
    %v895 = vmul.f32 %v844, 1.442695
    %v896 = vpow.pop %v895
    %v897 = vmul.f32 %v845, 1.442695
    %v898 = vpow.pop %v897
    %v899 = vmul.f32 %v846, 1.442695
    %v900 = vpow.pop %v899
    %v901 = vmul.f32 %v847, 1.442695
    %v902 = vpow.pop %v901
    %v903 = vmul.f32 %v848, 1.442695
    %v904 = vpow.pop %v903
    %v905 = vmul.f32 %v849, 1.442695
    %v906 = vpow.pop %v905
    %v907 = vmul.f32 %v850, 1.442695
    %v908 = vpow.pop %v907
    %v909 = vmul.f32 %v851, 1.442695
    %v910 = vpow.pop %v909
    %v911 = vmul.f32 %v852, 1.442695
    %v912 = vpow.pop %v911
    %v913 = vmul.f32 %v853, 1.442695
    %v914 = vpow.pop %v913
    %v915 = vmul.f32 %v854, 1.442695
    %v916 = vpow.pop %v915
    %v917 = vmul.f32 %v855, 1.442695
    %v918 = vpow.pop %v917
    %v919 = vmul.f32 %v856, 1.442695
    %v920 = vpow.pop %v919
    %v921 = vmul.f32 %v857, 1.442695
    %v922 = vpow.pop %v921
    %v923 = vmul.f32 %v858, 1.442695
    %v924 = vpow.pop %v923
    %v925 = vmul.f32 %v859, 1.442695
    %v926 = vpow.pop %v925
    %v927 = vmul.f32 %v860, 1.442695
    %v928 = vpow.pop %v927
    %v929 = vmul.f32 %v861, 1.442695
    %v930 = vpow.pop %v929
    %v931 = vmul.f32 %v862, 1.442695
    %v932 = vpow.pop %v931
    %v933 = vmul.f32 %v863, 1.442695
    %v934 = vpow.pop %v933
    %v935 = vmul.f32 %v864, 1.442695
    %v936 = vpow.pop %v935
    %v937 = vmul.f32 %v865, 1.442695
    %v938 = vpow.pop %v937
    %v939 = vmul.f32 %v866, 1.442695
    %v940 = vpow.pop %v939
    %v941 = vmul.f32 %v867, 1.442695
    %v942 = vpow.pop %v941
    %v943 = vmul.f32 %v868, 1.442695
    %v944 = vpow.pop %v943
    %v945 = vsub.f32 1.0, %v870
    %v946 = vsub.f32 1.0, %v872
    %v947 = vsub.f32 1.0, %v874
    %v948 = vsub.f32 1.0, %v876
    %v949 = vsub.f32 1.0, %v878
    %v950 = vsub.f32 1.0, %v880
    %v951 = vsub.f32 1.0, %v882
    %v952 = vsub.f32 1.0, %v884
    %v953 = vsub.f32 1.0, %v886
    %v954 = vsub.f32 1.0, %v888
    %v955 = vsub.f32 1.0, %v890
    %v956 = vsub.f32 1.0, %v892
    %v957 = vsub.f32 1.0, %v894
    %v958 = vsub.f32 1.0, %v896
    %v959 = vsub.f32 1.0, %v898
    %v960 = vsub.f32 1.0, %v900
    %v961 = vsub.f32 1.0, %v902
    %v962 = vsub.f32 1.0, %v904
    %v963 = vsub.f32 1.0, %v906
    %v964 = vsub.f32 1.0, %v908
    %v965 = vsub.f32 1.0, %v910
    %v966 = vsub.f32 1.0, %v912
    %v967 = vsub.f32 1.0, %v914
    %v968 = vsub.f32 1.0, %v916
    %v969 = vsub.f32 1.0, %v918
    %v970 = vsub.f32 1.0, %v920
    %v971 = vsub.f32 1.0, %v922
    %v972 = vsub.f32 1.0, %v924
    %v973 = vsub.f32 1.0, %v926
    %v974 = vsub.f32 1.0, %v928
    %v975 = vsub.f32 1.0, %v930
    %v976 = vsub.f32 1.0, %v932
    %v977 = vsub.f32 1.0, %v934
    %v978 = vsub.f32 1.0, %v936
    %v979 = vsub.f32 1.0, %v938
    %v980 = vsub.f32 1.0, %v940
    %v981 = vsub.f32 1.0, %v942
    %v982 = vsub.f32 1.0, %v944
    %v983 = vmax.f32 %v945, 0.0
    %v984 = vmax.f32 %v946, 0.0
    %v985 = vmax.f32 %v947, 0.0
    %v986 = vmax.f32 %v948, 0.0
    %v987 = vmax.f32 %v949, 0.0
    %v988 = vmax.f32 %v950, 0.0
    %v989 = vmax.f32 %v951, 0.0
    %v990 = vmax.f32 %v952, 0.0
    %v991 = vmax.f32 %v953, 0.0
    %v992 = vmax.f32 %v954, 0.0
    %v993 = vmax.f32 %v955, 0.0
    %v994 = vmax.f32 %v956, 0.0
    %v995 = vmax.f32 %v957, 0.0
    %v996 = vmax.f32 %v958, 0.0
    %v997 = vmax.f32 %v959, 0.0
    %v998 = vmax.f32 %v960, 0.0
    %v999 = vmax.f32 %v961, 0.0
    %v1000 = vmax.f32 %v962, 0.0
    %v1001 = vmax.f32 %v963, 0.0
    %v1002 = vmax.f32 %v964, 0.0
    %v1003 = vmax.f32 %v965, 0.0
    %v1004 = vmax.f32 %v966, 0.0
    %v1005 = vmax.f32 %v967, 0.0
    %v1006 = vmax.f32 %v968, 0.0
    %v1007 = vmax.f32 %v969, 0.0
    %v1008 = vmax.f32 %v970, 0.0
    %v1009 = vmax.f32 %v971, 0.0
    %v1010 = vmax.f32 %v972, 0.0
    %v1011 = vmax.f32 %v973, 0.0
    %v1012 = vmax.f32 %v974, 0.0
    %v1013 = vmax.f32 %v975, 0.0
    %v1014 = vmax.f32 %v976, 0.0
    %v1015 = vmax.f32 %v977, 0.0
    %v1016 = vmax.f32 %v978, 0.0
    %v1017 = vmax.f32 %v979, 0.0
    %v1018 = vmax.f32 %v980, 0.0
    %v1019 = vmax.f32 %v981, 0.0
    %v1020 = vmax.f32 %v982, 0.0
    %v1021 = vmul.f32 %v983, %v983
    %v1022 = vmul.f32 %v984, %v984
    %v1023 = vmul.f32 %v985, %v985
    %v1024 = vmul.f32 %v986, %v986
    %v1025 = vmul.f32 %v987, %v987
    %v1026 = vmul.f32 %v988, %v988
    %v1027 = vmul.f32 %v989, %v989
    %v1028 = vmul.f32 %v990, %v990
    %v1029 = vmul.f32 %v991, %v991
    %v1030 = vmul.f32 %v992, %v992
    %v1031 = vmul.f32 %v993, %v993
    %v1032 = vmul.f32 %v994, %v994
    %v1033 = vmul.f32 %v995, %v995
    %v1034 = vmul.f32 %v996, %v996
    %v1035 = vmul.f32 %v997, %v997
    %v1036 = vmul.f32 %v998, %v998
    %v1037 = vmul.f32 %v999, %v999
    %v1038 = vmul.f32 %v1000, %v1000
    %v1039 = vmul.f32 %v1001, %v1001
    %v1040 = vmul.f32 %v1002, %v1002
    %v1041 = vmul.f32 %v1003, %v1003
    %v1042 = vmul.f32 %v1004, %v1004
    %v1043 = vmul.f32 %v1005, %v1005
    %v1044 = vmul.f32 %v1006, %v1006
    %v1045 = vmul.f32 %v1007, %v1007
    %v1046 = vmul.f32 %v1008, %v1008
    %v1047 = vmul.f32 %v1009, %v1009
    %v1048 = vmul.f32 %v1010, %v1010
    %v1049 = vmul.f32 %v1011, %v1011
    %v1050 = vmul.f32 %v1012, %v1012
    %v1051 = vmul.f32 %v1013, %v1013
    %v1052 = vmul.f32 %v1014, %v1014
    %v1053 = vmul.f32 %v1015, %v1015
    %v1054 = vmul.f32 %v1016, %v1016
    %v1055 = vmul.f32 %v1017, %v1017
    %v1056 = vmul.f32 %v1018, %v1018
    %v1057 = vmul.f32 %v1019, %v1019
    %v1058 = vmul.f32 %v1020, %v1020
    %v1059 = vsub.f32 0.0, %v831
    %v1060 = vsub.f32 0.0, %v832
    %v1061 = vsub.f32 0.0, %v833
    %v1062 = vsub.f32 0.0, %v834
    %v1063 = vsub.f32 0.0, %v835
    %v1064 = vsub.f32 0.0, %v836
    %v1065 = vsub.f32 0.0, %v837
    %v1066 = vsub.f32 0.0, %v838
    %v1067 = vsub.f32 0.0, %v839
    %v1068 = vsub.f32 0.0, %v840
    %v1069 = vsub.f32 0.0, %v841
    %v1070 = vsub.f32 0.0, %v842
    %v1071 = vsub.f32 0.0, %v843
    %v1072 = vsub.f32 0.0, %v844
    %v1073 = vsub.f32 0.0, %v845
    %v1074 = vsub.f32 0.0, %v846
    %v1075 = vsub.f32 0.0, %v847
    %v1076 = vsub.f32 0.0, %v848
    %v1077 = vsub.f32 0.0, %v849
    %v1078 = vsub.f32 0.0, %v850
    %v1079 = vsub.f32 0.0, %v851
    %v1080 = vsub.f32 0.0, %v852
    %v1081 = vsub.f32 0.0, %v853
    %v1082 = vsub.f32 0.0, %v854
    %v1083 = vsub.f32 0.0, %v855
    %v1084 = vsub.f32 0.0, %v856
    %v1085 = vsub.f32 0.0, %v857
    %v1086 = vsub.f32 0.0, %v858
    %v1087 = vsub.f32 0.0, %v859
    %v1088 = vsub.f32 0.0, %v860
    %v1089 = vsub.f32 0.0, %v861
    %v1090 = vsub.f32 0.0, %v862
    %v1091 = vsub.f32 0.0, %v863
    %v1092 = vsub.f32 0.0, %v864
    %v1093 = vsub.f32 0.0, %v865
    %v1094 = vsub.f32 0.0, %v866
    %v1095 = vsub.f32 0.0, %v867
    %v1096 = vsub.f32 0.0, %v868
    %v1097 = vmul.f32 %v1021, %v1059
    %v1098 = vmul.f32 %v1022, %v1060
    %v1099 = vmul.f32 %v1023, %v1061
    %v1100 = vmul.f32 %v1024, %v1062
    %v1101 = vmul.f32 %v1025, %v1063
    %v1102 = vmul.f32 %v1026, %v1064
    %v1103 = vmul.f32 %v1027, %v1065
    %v1104 = vmul.f32 %v1028, %v1066
    %v1105 = vmul.f32 %v1029, %v1067
    %v1106 = vmul.f32 %v1030, %v1068
    %v1107 = vmul.f32 %v1031, %v1069
    %v1108 = vmul.f32 %v1032, %v1070
    %v1109 = vmul.f32 %v1033, %v1071
    %v1110 = vmul.f32 %v1034, %v1072
    %v1111 = vmul.f32 %v1035, %v1073
    %v1112 = vmul.f32 %v1036, %v1074
    %v1113 = vmul.f32 %v1037, %v1075
    %v1114 = vmul.f32 %v1038, %v1076
    %v1115 = vmul.f32 %v1039, %v1077
    %v1116 = vmul.f32 %v1040, %v1078
    %v1117 = vmul.f32 %v1041, %v1079
    %v1118 = vmul.f32 %v1042, %v1080
    %v1119 = vmul.f32 %v1043, %v1081
    %v1120 = vmul.f32 %v1044, %v1082
    %v1121 = vmul.f32 %v1045, %v1083
    %v1122 = vmul.f32 %v1046, %v1084
    %v1123 = vmul.f32 %v1047, %v1085
    %v1124 = vmul.f32 %v1048, %v1086
    %v1125 = vmul.f32 %v1049, %v1087
    %v1126 = vmul.f32 %v1050, %v1088
    %v1127 = vmul.f32 %v1051, %v1089
    %v1128 = vmul.f32 %v1052, %v1090
    %v1129 = vmul.f32 %v1053, %v1091
    %v1130 = vmul.f32 %v1054, %v1092
    %v1131 = vmul.f32 %v1055, %v1093
    %v1132 = vmul.f32 %v1056, %v1094
    %v1133 = vmul.f32 %v1057, %v1095
    %v1134 = vmul.f32 %v1058, %v1096
    %v1135 = vld [vmem:[%s2] sm:$0x1]
    %v1137 = vperm.slane %v1135, 0
    %v1139 = vsel %vm602, %v1137, 0.0
    %v1140 = vsel %vm603, %v1137, 0.0
    %v1141 = vsel %vm604, %v1137, 0.0
    %v1142 = vsel %vm605, %v1137, 0.0
    %v1143 = vsel %vm606, %v1137, 0.0
    %v1144 = vsel %vm607, %v1137, 0.0
    %v1145 = vsel %vm608, %v1137, 0.0
    %v1146 = vsel %vm609, %v1137, 0.0
    %v1147 = vsel %vm610, %v1137, 0.0
    %v1148 = vsel %vm611, %v1137, 0.0
    %v1149 = vsel %vm612, %v1137, 0.0
    %v1150 = vsel %vm613, %v1137, 0.0
    %v1151 = vsel %vm614, %v1137, 0.0
    %v1152 = vsel %vm615, %v1137, 0.0
    %v1153 = vsel %vm616, %v1137, 0.0
    %v1154 = vsel %vm617, %v1137, 0.0
    %v1155 = vsel %vm618, %v1137, 0.0
    %v1156 = vsel %vm619, %v1137, 0.0
    %v1157 = vsel %vm620, %v1137, 0.0
    %v1158 = vsel %vm621, %v1137, 0.0
    %v1159 = vsel %vm622, %v1137, 0.0
    %v1160 = vsel %vm623, %v1137, 0.0
    %v1161 = vsel %vm624, %v1137, 0.0
    %v1162 = vsel %vm625, %v1137, 0.0
    %v1163 = vsel %vm626, %v1137, 0.0
    %v1164 = vsel %vm627, %v1137, 0.0
    %v1165 = vsel %vm628, %v1137, 0.0
    %v1166 = vsel %vm629, %v1137, 0.0
    %v1167 = vsel %vm630, %v1137, 0.0
    %v1168 = vsel %vm631, %v1137, 0.0
    %v1169 = vsel %vm632, %v1137, 0.0
    %v1170 = vsel %vm633, %v1137, 0.0
    %v1171 = vsel %vm634, %v1137, 0.0
    %v1172 = vsel %vm635, %v1137, 0.0
    %v1173 = vsel %vm636, %v1137, 0.0
    %v1174 = vsel %vm637, %v1137, 0.0
    %v1175 = vsel %vm638, %v1137, 0.0
    %v1176 = vsel %vm639, %v1137, 0.0
    %1177 = vadd.xlane.f32.xlu0 %v1139
    %v1178 = vpop.xlane.xlu0 %1177
    %1179 = vadd.xlane.f32.xlu0 %v1140
    %v1180 = vpop.xlane.xlu0 %1179
    %1181 = vadd.xlane.f32.xlu0 %v1141
    %v1182 = vpop.xlane.xlu0 %1181
    %1183 = vadd.xlane.f32.xlu0 %v1142
    %v1184 = vpop.xlane.xlu0 %1183
    %1185 = vadd.xlane.f32.xlu0 %v1143
    %v1186 = vpop.xlane.xlu0 %1185
    %1187 = vadd.xlane.f32.xlu0 %v1144
    %v1188 = vpop.xlane.xlu0 %1187
    %1189 = vadd.xlane.f32.xlu0 %v1145
    %v1190 = vpop.xlane.xlu0 %1189
    %1191 = vadd.xlane.f32.xlu0 %v1146
    %v1192 = vpop.xlane.xlu0 %1191
    %1193 = vadd.xlane.f32.xlu0 %v1147
    %v1194 = vpop.xlane.xlu0 %1193
    %1195 = vadd.xlane.f32.xlu0 %v1148
    %v1196 = vpop.xlane.xlu0 %1195
    %1197 = vadd.xlane.f32.xlu0 %v1149
    %v1198 = vpop.xlane.xlu0 %1197
    %1199 = vadd.xlane.f32.xlu0 %v1150
    %v1200 = vpop.xlane.xlu0 %1199
    %1201 = vadd.xlane.f32.xlu0 %v1151
    %v1202 = vpop.xlane.xlu0 %1201
    %1203 = vadd.xlane.f32.xlu0 %v1152
    %v1204 = vpop.xlane.xlu0 %1203
    %1205 = vadd.xlane.f32.xlu0 %v1153
    %v1206 = vpop.xlane.xlu0 %1205
    %1207 = vadd.xlane.f32.xlu0 %v1154
    %v1208 = vpop.xlane.xlu0 %1207
    %1209 = vadd.xlane.f32.xlu0 %v1155
    %v1210 = vpop.xlane.xlu0 %1209
    %1211 = vadd.xlane.f32.xlu0 %v1156
    %v1212 = vpop.xlane.xlu0 %1211
    %1213 = vadd.xlane.f32.xlu0 %v1157
    %v1214 = vpop.xlane.xlu0 %1213
    %1215 = vadd.xlane.f32.xlu0 %v1158
    %v1216 = vpop.xlane.xlu0 %1215
    %1217 = vadd.xlane.f32.xlu0 %v1159
    %v1218 = vpop.xlane.xlu0 %1217
    %1219 = vadd.xlane.f32.xlu0 %v1160
    %v1220 = vpop.xlane.xlu0 %1219
    %1221 = vadd.xlane.f32.xlu0 %v1161
    %v1222 = vpop.xlane.xlu0 %1221
    %1223 = vadd.xlane.f32.xlu0 %v1162
    %v1224 = vpop.xlane.xlu0 %1223
    %1225 = vadd.xlane.f32.xlu0 %v1163
    %v1226 = vpop.xlane.xlu0 %1225
    %1227 = vadd.xlane.f32.xlu0 %v1164
    %v1228 = vpop.xlane.xlu0 %1227
    %1229 = vadd.xlane.f32.xlu0 %v1165
    %v1230 = vpop.xlane.xlu0 %1229
    %1231 = vadd.xlane.f32.xlu0 %v1166
    %v1232 = vpop.xlane.xlu0 %1231
    %1233 = vadd.xlane.f32.xlu0 %v1167
    %v1234 = vpop.xlane.xlu0 %1233
    %1235 = vadd.xlane.f32.xlu0 %v1168
    %v1236 = vpop.xlane.xlu0 %1235
    %1237 = vadd.xlane.f32.xlu0 %v1169
    %v1238 = vpop.xlane.xlu0 %1237
    %1239 = vadd.xlane.f32.xlu0 %v1170
    %v1240 = vpop.xlane.xlu0 %1239
    %1241 = vadd.xlane.f32.xlu0 %v1171
    %v1242 = vpop.xlane.xlu0 %1241
    %1243 = vadd.xlane.f32.xlu0 %v1172
    %v1244 = vpop.xlane.xlu0 %1243
    %1245 = vadd.xlane.f32.xlu0 %v1173
    %v1246 = vpop.xlane.xlu0 %1245
    %1247 = vadd.xlane.f32.xlu0 %v1174
    %v1248 = vpop.xlane.xlu0 %1247
    %1249 = vadd.xlane.f32.xlu0 %v1175
    %v1250 = vpop.xlane.xlu0 %1249
    %v1251 = vsel %vm215, %v1176, 0.0
    %1252 = vadd.xlane.f32.xlu0 %v1251
    %v1253 = vpop.xlane.xlu0 %1252
    %v1254 = vmul.f32 %v1097, %v1178
    %v1255 = vmul.f32 %v1098, %v1180
    %v1256 = vmul.f32 %v1099, %v1182
    %v1257 = vmul.f32 %v1100, %v1184
    %v1258 = vmul.f32 %v1101, %v1186
    %v1259 = vmul.f32 %v1102, %v1188
    %v1260 = vmul.f32 %v1103, %v1190
    %v1261 = vmul.f32 %v1104, %v1192
    %v1262 = vmul.f32 %v1105, %v1194
    %v1263 = vmul.f32 %v1106, %v1196
    %v1264 = vmul.f32 %v1107, %v1198
    %v1265 = vmul.f32 %v1108, %v1200
    %v1266 = vmul.f32 %v1109, %v1202
    %v1267 = vmul.f32 %v1110, %v1204
    %v1268 = vmul.f32 %v1111, %v1206
    %v1269 = vmul.f32 %v1112, %v1208
    %v1270 = vmul.f32 %v1113, %v1210
    %v1271 = vmul.f32 %v1114, %v1212
    %v1272 = vmul.f32 %v1115, %v1214
    %v1273 = vmul.f32 %v1116, %v1216
    %v1274 = vmul.f32 %v1117, %v1218
    %v1275 = vmul.f32 %v1118, %v1220
    %v1276 = vmul.f32 %v1119, %v1222
    %v1277 = vmul.f32 %v1120, %v1224
    %v1278 = vmul.f32 %v1121, %v1226
    %v1279 = vmul.f32 %v1122, %v1228
    %v1280 = vmul.f32 %v1123, %v1230
    %v1281 = vmul.f32 %v1124, %v1232
    %v1282 = vmul.f32 %v1125, %v1234
    %v1283 = vmul.f32 %v1126, %v1236
    %v1284 = vmul.f32 %v1127, %v1238
    %v1285 = vmul.f32 %v1128, %v1240
    %v1286 = vmul.f32 %v1129, %v1242
    %v1287 = vmul.f32 %v1130, %v1244
    %v1288 = vmul.f32 %v1131, %v1246
    %v1289 = vmul.f32 %v1132, %v1248
    %v1290 = vmul.f32 %v1133, %v1250
    %v1291 = vmul.f32 %v1134, %v1253
    %v1292 = vld [vmem:[#allocation2] sm:$0x1]
    %vm1293 = vcmask 7168
    %v1294 = vsel %vm1293, %v1254, 0.0
    %v1295 = vsel %vm1293, %v1255, 0.0
    %v1296 = vadd.f32 %v1294, %v1295
    %v1297 = vsel %vm1293, %v1256, 0.0
    %v1298 = vadd.f32 %v1296, %v1297
    %v1299 = vsel %vm1293, %v1257, 0.0
    %v1300 = vadd.f32 %v1298, %v1299
    %v1301 = vsel %vm1293, %v1258, 0.0
    %v1302 = vadd.f32 %v1300, %v1301
    %v1303 = vsel %vm1293, %v1259, 0.0
    %v1304 = vadd.f32 %v1302, %v1303
    %v1305 = vsel %vm1293, %v1260, 0.0
    %v1306 = vadd.f32 %v1304, %v1305
    %v1307 = vsel %vm1293, %v1261, 0.0
    %v1308 = vadd.f32 %v1306, %v1307
    %v1309 = vsel %vm1293, %v1262, 0.0
    %v1310 = vadd.f32 %v1308, %v1309
    %v1311 = vsel %vm1293, %v1263, 0.0
    %v1312 = vadd.f32 %v1310, %v1311
    %v1313 = vsel %vm1293, %v1264, 0.0
    %v1314 = vadd.f32 %v1312, %v1313
    %v1315 = vsel %vm1293, %v1265, 0.0
    %v1316 = vadd.f32 %v1314, %v1315
    %v1317 = vsel %vm1293, %v1266, 0.0
    %v1318 = vadd.f32 %v1316, %v1317
    %v1319 = vsel %vm1293, %v1267, 0.0
    %v1320 = vadd.f32 %v1318, %v1319
    %v1321 = vsel %vm1293, %v1268, 0.0
    %v1322 = vadd.f32 %v1320, %v1321
    %v1323 = vsel %vm1293, %v1269, 0.0
    %v1324 = vadd.f32 %v1322, %v1323
    %v1325 = vsel %vm1293, %v1270, 0.0
    %v1326 = vadd.f32 %v1324, %v1325
    %v1327 = vsel %vm1293, %v1271, 0.0
    %v1328 = vadd.f32 %v1326, %v1327
    %v1329 = vsel %vm1293, %v1272, 0.0
    %v1330 = vadd.f32 %v1328, %v1329
    %v1331 = vsel %vm1293, %v1273, 0.0
    %v1332 = vadd.f32 %v1330, %v1331
    %v1333 = vsel %vm1293, %v1274, 0.0
    %v1334 = vadd.f32 %v1332, %v1333
    %v1335 = vsel %vm1293, %v1275, 0.0
    %v1336 = vadd.f32 %v1334, %v1335
    %v1337 = vsel %vm1293, %v1276, 0.0
    %v1338 = vadd.f32 %v1336, %v1337
    %v1339 = vsel %vm1293, %v1277, 0.0
    %v1340 = vadd.f32 %v1338, %v1339
    %v1341 = vsel %vm1293, %v1278, 0.0
    %v1342 = vadd.f32 %v1340, %v1341
    %v1343 = vsel %vm1293, %v1279, 0.0
    %v1344 = vadd.f32 %v1342, %v1343
    %v1345 = vsel %vm1293, %v1280, 0.0
    %v1346 = vadd.f32 %v1344, %v1345
    %v1347 = vsel %vm1293, %v1281, 0.0
    %v1348 = vadd.f32 %v1346, %v1347
    %v1349 = vsel %vm1293, %v1282, 0.0
    %v1350 = vadd.f32 %v1348, %v1349
    %v1351 = vsel %vm1293, %v1283, 0.0
    %v1352 = vadd.f32 %v1350, %v1351
    %v1353 = vsel %vm1293, %v1284, 0.0
    %v1354 = vadd.f32 %v1352, %v1353
    %v1355 = vsel %vm1293, %v1285, 0.0
    %v1356 = vadd.f32 %v1354, %v1355
    %v1357 = vsel %vm1293, %v1286, 0.0
    %v1358 = vadd.f32 %v1356, %v1357
    %v1359 = vsel %vm1293, %v1287, 0.0
    %v1360 = vadd.f32 %v1358, %v1359
    %v1361 = vsel %vm1293, %v1288, 0.0
    %v1362 = vadd.f32 %v1360, %v1361
    %v1363 = vsel %vm1293, %v1289, 0.0
    %v1364 = vadd.f32 %v1362, %v1363
    %v1365 = vsel %vm1293, %v1290, 0.0
    %v1366 = vadd.f32 %v1364, %v1365
    %vm1367 = vcmask 3072
    %v1368 = vsel %vm1367, %v1291, 0.0
    %v1369 = vadd.f32 %v1366, %v1368
    %1370 = vadd.xlane.f32.xlu0 %v1369
    %v1371 = vpop.xlane.xlu0 %1370
    %v1372 = vrot.slane %v1371, 4
    %v1373 = vadd.f32 %v1371, %v1372
    %v1374 = vrot.slane %v1373, 2
    %v1375 = vadd.f32 %v1373, %v1374
    %v1376 = vrot.slane %v1375, 1
    %v1377 = vadd.f32 %v1375, %v1376
    %s1378 = vtos %v1377
    %v1379 = vstv %s1378
    %v1380 = vadd.f32 %v1292, %v1379
    %vm1381 = vcmask 0
    %1382 = vst.msk [vmem:[#allocation2] sm:$0x1] %vm1381, %v1380
    // Predicated region
    $region18: #{tpu_custom_call.1} parent=1 // pred_check
      _
    $region19: #{tpu_custom_call.1} parent=1 // pred_check_branch
      %1384 = sbr.rel (0) target = $region21
    $region20: #{tpu_custom_call.1} parent=1 // pred_region
      %1386 = vsyncadd [#allocation3], 0
      %s1388 = sshll.u32 [#allocation2], 4
      %s1389 = int_to_ptr.vmem [resolvable:$true] %s1388
      %s1390 = sshll.u32 %s3, 4
      %s1391 = int_to_ptr.hbm [resolvable:$true] %s1390
      %1393 = dma.vmem_to_hbm [thread:$0]  %s1389, 16, %s1391, [#allocation3]
    $region21: #{tpu_custom_call.1} parent=1 // pred_fallthru
      _
    // Predicated region
    $region22: #{tpu_custom_call.1} parent=1 // pred_check
      _
    $region23: #{tpu_custom_call.1} parent=1 // pred_check_branch
      %1395 = sbr.rel (0) target = $region25
    $region24: #{tpu_custom_call.1} parent=1 // pred_region
      %1397 = dma.done [#allocation3], 16
    $region25: #{tpu_custom_call.1} parent=1 // pred_fallthru
      _
    %1398 = vsyncpa [#allocation3], 1

</llo_original>
